<compile_context>
chip_gen: v5e
topology: v5e:2x2
jax: 0.10.0
libtpu: 0.0.40
codegen_flags: <defaults>
</compile_context>

<pallas_src>
import functools

import jax
import jax.numpy as jnp
import numpy as np
from jax.experimental import pallas as pl
from jax.experimental.pallas import tpu as pltpu


# ----------------------------- parameter setup (host-side, plain numpy) ------

def _gaussian_1d(window_size: int, sigma: float) -> np.ndarray:
    x = np.arange(window_size, dtype=np.float64)
    g = np.exp(-((x - window_size // 2) ** 2) / (2.0 * sigma ** 2))
    g = g / g.sum()
    return g.astype(np.float32)


def _band_matrix(n: int, g: np.ndarray, window_size: int) -> np.ndarray:
    # M[i, r] = g[r - i + half] inside the band, 0 outside.  With zero padding,
    # conv1d(x, g, padding=half) along an axis == M @ x (or x @ M; M symmetric).
    half = window_size // 2
    idx = np.arange(n)
    diff = idx[None, :] - idx[:, None] + half
    mask = (diff >= 0) & (diff < window_size)
    vals = g[np.clip(diff, 0, window_size - 1)]
    return np.where(mask, vals, 0.0).astype(np.float32)


def _block_diag(block: np.ndarray, count: int) -> np.ndarray:
    n = block.shape[0]
    out = np.zeros((count * n, count * n), dtype=np.float32)
    for i in range(count):
        out[i * n:(i + 1) * n, i * n:(i + 1) * n] = block
    return out


# ----------------------------- Pallas kernel ---------------------------------

def _ssim_kernel(mh_ref, mw_ref, img1_ref, img2_ref, out_ref):
    # img*_ref: (H, ppg*W) lane-dense block for one plane group.
    x1 = img1_ref[...].astype(jnp.float32)
    x2 = img2_ref[...].astype(jnp.float32)
    mh = mh_ref[...]           # (H, H) dense Gaussian band matrix
    mw = mw_ref[...]           # (ppg*W, ppg*W) block-diag of (W, W) bands

    def conv(p):
        # Separable depthwise "same" Gaussian conv:  Mh @ p @ Mw_blockdiag.
        # Explicit per-dot precision (no global config side effect); HIGHEST
        # because the sigma terms below cancel nearly-equal quantities.
        t = jnp.dot(mh, p, preferred_element_type=jnp.float32,
                    precision=jax.lax.Precision.HIGHEST)
        return jnp.dot(t, mw, preferred_element_type=jnp.float32,
                       precision=jax.lax.Precision.HIGHEST)

    # 5 products conv'd independently (no sublane concat, no 5x block-diag Mh).
    mu1 = conv(x1)
    mu2 = conv(x2)
    e11 = conv(x1 * x1)
    e22 = conv(x2 * x2)
    e12 = conv(x1 * x2)

    mu1_sq = mu1 * mu1
    mu2_sq = mu2 * mu2
    mu1_mu2 = mu1 * mu2
    sigma1_sq = e11 - mu1_sq
    sigma2_sq = e22 - mu2_sq
    sigma12 = e12 - mu1_mu2

    c1 = 0.01 ** 2
    c2 = 0.03 ** 2
    num = (2.0 * mu1_mu2 + c1) * (2.0 * sigma12 + c2)
    den = (mu1_sq + mu2_sq + c1) * (sigma1_sq + sigma2_sq + c2)
    # EUP approximate reciprocal: |ssim| <= 1, so error << 1e-3 tolerance.
    ssim_map = num * pl.reciprocal(den, approx=True)

    # Per-lane (column) partial sums for this plane group -> lane-dense output
    # row.  Cross-lane reduction + mean finish in the jitted wrapper.
    out_ref[...] = jnp.sum(ssim_map, axis=0, keepdims=True)[None, :, :]


# ----------------------------- cached, jitted wrapper -------------------------

@functools.lru_cache(maxsize=None)
def _build_ssim_fn(N, C, H, W, window_size, sigma, dtype_name):
    P = N * C
    # Pack as many planes as fit in 128 lanes per grid step (lane-dense blocks);
    # remaining plane groups form a "parallel" grid axis (megacore on v7x).
    ppg = max(1, min(P, 128 // max(W, 1)))
    while P % ppg != 0:
        ppg -= 1
    G = P // ppg
    lanes = ppg * W

    g1d = _gaussian_1d(window_size, sigma)
    # Device-resident constants, built once per shape/config (cached).
    mh = jnp.asarray(_band_matrix(H, g1d, window_size))                  # (H, H)
    mw_bd = jnp.asarray(_block_diag(_band_matrix(W, g1d, window_size), ppg))

    kernel_call = pl.pallas_call(
        _ssim_kernel,
        out_shape=jax.ShapeDtypeStruct((G, 1, lanes), jnp.float32),
        grid=(G,),
        in_specs=[
            pl.BlockSpec((H, H), lambda g: (0, 0)),            # Mh (resident)
            pl.BlockSpec((lanes, lanes), lambda g: (0, 0)),    # Mw block-diag
            pl.BlockSpec((H, lanes), lambda g: (0, g)),        # img1 group
            pl.BlockSpec((H, lanes), lambda g: (0, g)),        # img2 group
        ],
        out_specs=pl.BlockSpec((1, 1, lanes), lambda g: (g, 0, 0)),
        compiler_params=pltpu.CompilerParams(
            dimension_semantics=("parallel",)),
    )

    @jax.jit
    def run(img1, img2):
        # Lane-dense layout (H, N*C*W); transpose/reshape stay inside the jit.
        z1 = jnp.transpose(img1, (2, 0, 1, 3)).reshape(H, P * W)
        z2 = jnp.transpose(img2, (2, 0, 1, 3)).reshape(H, P * W)
        partial = kernel_call(mh, mw_bd, z1, z2)
        return jnp.sum(partial) / (N * C * H * W)

    return run


def ssim_pallas(img1, img2, window_size: int = 11, sigma: float = 1.5):
    assert img1.shape == img2.shape
    N, C, H, W = img1.shape
    fn = _build_ssim_fn(N, C, H, W, int(window_size), float(sigma),
                        str(img1.dtype))
    return fn(img1, img2)


# ----------------------------- pure-JAX reference (sanity check) -------------

def ssim_reference(img1, img2, window_size: int = 11, sigma: float = 1.5):
    N, C, H, W = img1.shape
    g = jnp.asarray(_gaussian_1d(window_size, sigma))
    w2d = jnp.outer(g, g)
    window = jnp.broadcast_to(w2d, (C, 1, window_size, window_size))
    pad = window_size // 2

    def conv(x):
        return jax.lax.conv_general_dilated(
            x, window, window_strides=(1, 1),
            padding=[(pad, pad), (pad, pad)],
            dimension_numbers=("NCHW", "OIHW", "NCHW"),
            feature_group_count=C,
            precision=jax.lax.Precision.HIGHEST)

    mu1 = conv(img1)
    mu2 = conv(img2)
    mu1_sq, mu2_sq, mu1_mu2 = mu1 * mu1, mu2 * mu2, mu1 * mu2
    sigma1_sq = conv(img1 * img1) - mu1_sq
    sigma2_sq = conv(img2 * img2) - mu2_sq
    sigma12 = conv(img1 * img2) - mu1_mu2
    c1, c2 = 0.01 ** 2, 0.03 ** 2
    ssim_map = ((2 * mu1_mu2 + c1) * (2 * sigma12 + c2)) / (
        (mu1_sq + mu2_sq + c1) * (sigma1_sq + sigma2_sq + c2))
    return jnp.mean(ssim_map)


# ----------------------------- main -------------------------------------------

if __name__ == "__main__":
    key = jax.random.PRNGKey(0)
    k1, k2 = jax.random.split(key)
    N, C, H, W = 2, 4, 16, 16
    img1 = jax.random.uniform(k1, (N, C, H, W), dtype=jnp.float32)
    img2 = jax.random.uniform(k2, (N, C, H, W), dtype=jnp.float32)

    result = ssim_pallas(img1, img2, window_size=11)
    result = jax.block_until_ready(result)

    ref = jax.block_until_ready(ssim_reference(img1, img2, window_size=11))
    assert np.allclose(np.asarray(result), np.asarray(ref),
                       rtol=1e-3, atol=1e-3), (result, ref)

    print("KERNEL_OK")
</pallas_src>

<mosaic_0001>
module attributes {stable_mosaic.version = 11 : i64} {
  func.func @_ssim_kernel(%arg0: i32, %arg1: memref<16x16xf32, #tpu.memory_space<vmem>>, %arg2: memref<128x128xf32, #tpu.memory_space<vmem>>, %arg3: memref<16x128xf32, #tpu.memory_space<vmem>>, %arg4: memref<16x128xf32, #tpu.memory_space<vmem>>, %arg5: memref<1x1x128xf32, #tpu.memory_space<vmem>>) attributes {dimension_semantics = [#tpu.dimension_semantics<parallel>], iteration_bounds = array<i64: 1>, scalar_prefetch = 0 : i64, scratch_operands = 0 : i64, tpu.core_type = #tpu.core_type<tc>, window_params = [{pipeline_mode = #tpu.pipeline_mode<synchronous>, transform_indices = @transform_0, window_bounds = array<i64: 16, 16>}, {pipeline_mode = #tpu.pipeline_mode<synchronous>, transform_indices = @transform_1, window_bounds = array<i64: 128, 128>}, {transform_indices = @transform_2, window_bounds = array<i64: 16, 128>}, {transform_indices = @transform_3, window_bounds = array<i64: 16, 128>}, {transform_indices = @transform_4, window_bounds = array<i64: 1, 1, 128>}]} {
    %c0 = arith.constant 0 : index
    %c0_0 = arith.constant 0 : index
    %0 = vector.load %arg3[%c0, %c0_0] : memref<16x128xf32, #tpu.memory_space<vmem>>, vector<16x128xf32>
    %c0_1 = arith.constant 0 : index
    %c0_2 = arith.constant 0 : index
    %1 = vector.load %arg4[%c0_1, %c0_2] : memref<16x128xf32, #tpu.memory_space<vmem>>, vector<16x128xf32>
    %c0_3 = arith.constant 0 : index
    %c0_4 = arith.constant 0 : index
    %2 = vector.load %arg1[%c0_3, %c0_4] : memref<16x16xf32, #tpu.memory_space<vmem>>, vector<16x16xf32>
    %c0_5 = arith.constant 0 : index
    %c0_6 = arith.constant 0 : index
    %3 = vector.load %arg2[%c0_5, %c0_6] : memref<128x128xf32, #tpu.memory_space<vmem>>, vector<128x128xf32>
    %cst = arith.constant dense<0.000000e+00> : vector<16x128xf32>
    %4 = tpu.matmul %2, %0, %cst {dimension_numbers = #tpu.dot_dimension_numbers<[1], [0], [0], [1], [0, 0, 1, 1], [], []>, precision = #tpu.contract_precision<fp32>} : vector<16x16xf32>, vector<16x128xf32>, vector<16x128xf32> -> vector<16x128xf32>
    %cst_7 = arith.constant dense<0.000000e+00> : vector<16x128xf32>
    %5 = tpu.matmul %4, %3, %cst_7 {dimension_numbers = #tpu.dot_dimension_numbers<[1], [0], [0], [1], [0, 0, 1, 1], [], []>, precision = #tpu.contract_precision<fp32>} : vector<16x128xf32>, vector<128x128xf32>, vector<16x128xf32> -> vector<16x128xf32>
    %cst_8 = arith.constant dense<0.000000e+00> : vector<16x128xf32>
    %6 = tpu.matmul %2, %1, %cst_8 {dimension_numbers = #tpu.dot_dimension_numbers<[1], [0], [0], [1], [0, 0, 1, 1], [], []>, precision = #tpu.contract_precision<fp32>} : vector<16x16xf32>, vector<16x128xf32>, vector<16x128xf32> -> vector<16x128xf32>
    %cst_9 = arith.constant dense<0.000000e+00> : vector<16x128xf32>
    %7 = tpu.matmul %6, %3, %cst_9 {dimension_numbers = #tpu.dot_dimension_numbers<[1], [0], [0], [1], [0, 0, 1, 1], [], []>, precision = #tpu.contract_precision<fp32>} : vector<16x128xf32>, vector<128x128xf32>, vector<16x128xf32> -> vector<16x128xf32>
    %8 = arith.mulf %0, %0 : vector<16x128xf32>
    %cst_10 = arith.constant dense<0.000000e+00> : vector<16x128xf32>
    %9 = tpu.matmul %2, %8, %cst_10 {dimension_numbers = #tpu.dot_dimension_numbers<[1], [0], [0], [1], [0, 0, 1, 1], [], []>, precision = #tpu.contract_precision<fp32>} : vector<16x16xf32>, vector<16x128xf32>, vector<16x128xf32> -> vector<16x128xf32>
    %cst_11 = arith.constant dense<0.000000e+00> : vector<16x128xf32>
    %10 = tpu.matmul %9, %3, %cst_11 {dimension_numbers = #tpu.dot_dimension_numbers<[1], [0], [0], [1], [0, 0, 1, 1], [], []>, precision = #tpu.contract_precision<fp32>} : vector<16x128xf32>, vector<128x128xf32>, vector<16x128xf32> -> vector<16x128xf32>
    %11 = arith.mulf %1, %1 : vector<16x128xf32>
    %cst_12 = arith.constant dense<0.000000e+00> : vector<16x128xf32>
    %12 = tpu.matmul %2, %11, %cst_12 {dimension_numbers = #tpu.dot_dimension_numbers<[1], [0], [0], [1], [0, 0, 1, 1], [], []>, precision = #tpu.contract_precision<fp32>} : vector<16x16xf32>, vector<16x128xf32>, vector<16x128xf32> -> vector<16x128xf32>
    %cst_13 = arith.constant dense<0.000000e+00> : vector<16x128xf32>
    %13 = tpu.matmul %12, %3, %cst_13 {dimension_numbers = #tpu.dot_dimension_numbers<[1], [0], [0], [1], [0, 0, 1, 1], [], []>, precision = #tpu.contract_precision<fp32>} : vector<16x128xf32>, vector<128x128xf32>, vector<16x128xf32> -> vector<16x128xf32>
    %14 = arith.mulf %0, %1 : vector<16x128xf32>
    %cst_14 = arith.constant dense<0.000000e+00> : vector<16x128xf32>
    %15 = tpu.matmul %2, %14, %cst_14 {dimension_numbers = #tpu.dot_dimension_numbers<[1], [0], [0], [1], [0, 0, 1, 1], [], []>, precision = #tpu.contract_precision<fp32>} : vector<16x16xf32>, vector<16x128xf32>, vector<16x128xf32> -> vector<16x128xf32>
    %cst_15 = arith.constant dense<0.000000e+00> : vector<16x128xf32>
    %16 = tpu.matmul %15, %3, %cst_15 {dimension_numbers = #tpu.dot_dimension_numbers<[1], [0], [0], [1], [0, 0, 1, 1], [], []>, precision = #tpu.contract_precision<fp32>} : vector<16x128xf32>, vector<128x128xf32>, vector<16x128xf32> -> vector<16x128xf32>
    %17 = arith.mulf %5, %5 : vector<16x128xf32>
    %18 = arith.mulf %7, %7 : vector<16x128xf32>
    %19 = arith.mulf %5, %7 : vector<16x128xf32>
    %20 = arith.subf %10, %17 : vector<16x128xf32>
    %21 = arith.subf %13, %18 : vector<16x128xf32>
    %22 = arith.subf %16, %19 : vector<16x128xf32>
    %cst_16 = arith.constant 2.000000e+00 : f32
    %23 = vector.broadcast %cst_16 : f32 to vector<16x128xf32>
    %24 = arith.mulf %23, %19 : vector<16x128xf32>
    %cst_17 = arith.constant 9.99999974E-5 : f32
    %25 = vector.broadcast %cst_17 : f32 to vector<16x128xf32>
    %26 = arith.addf %24, %25 : vector<16x128xf32>
    %cst_18 = arith.constant 2.000000e+00 : f32
    %27 = vector.broadcast %cst_18 : f32 to vector<16x128xf32>
    %28 = arith.mulf %27, %22 : vector<16x128xf32>
    %cst_19 = arith.constant 8.99999984E-4 : f32
    %29 = vector.broadcast %cst_19 : f32 to vector<16x128xf32>
    %30 = arith.addf %28, %29 : vector<16x128xf32>
    %31 = arith.mulf %26, %30 : vector<16x128xf32>
    %32 = arith.addf %17, %18 : vector<16x128xf32>
    %cst_20 = arith.constant 9.99999974E-5 : f32
    %33 = vector.broadcast %cst_20 : f32 to vector<16x128xf32>
    %34 = arith.addf %32, %33 : vector<16x128xf32>
    %35 = arith.addf %20, %21 : vector<16x128xf32>
    %cst_21 = arith.constant 8.99999984E-4 : f32
    %36 = vector.broadcast %cst_21 : f32 to vector<16x128xf32>
    %37 = arith.addf %35, %36 : vector<16x128xf32>
    %38 = arith.mulf %34, %37 : vector<16x128xf32>
    %39 = tpu.reciprocal %38 {approx = true} : vector<16x128xf32> -> vector<16x128xf32>
    %40 = arith.mulf %31, %39 : vector<16x128xf32>
    %cst_22 = arith.constant dense<0.000000e+00> : vector<128xf32>
    %41 = vector.multi_reduction <add>, %40, %cst_22 [0] : vector<16x128xf32> to vector<128xf32>
    %42 = vector.shape_cast %41 : vector<128xf32> to vector<1x128xf32>
    %43 = vector.shape_cast %42 : vector<1x128xf32> to vector<1x1x128xf32>
    %c0_23 = arith.constant 0 : index
    %c0_24 = arith.constant 0 : index
    %c0_25 = arith.constant 0 : index
    %44 = vector.load %arg5[%c0_23, %c0_24, %c0_25] : memref<1x1x128xf32, #tpu.memory_space<vmem>>, vector<1x1x128xf32>
    tpu.vector_store %arg5[%c0_23, %c0_24, %c0_25], %43 {strides = array<i32>} : memref<1x1x128xf32, #tpu.memory_space<vmem>>, vector<1x1x128xf32>,
    return
  }
  func.func @transform_0(%arg0: i32) -> (i32, i32) {
    %c0_i32 = arith.constant 0 : i32
    %c0_i32_0 = arith.constant 0 : i32
    %c0_i32_1 = arith.constant 0 : i32
    return %c0_i32, %c0_i32_0 : i32, i32
  }
  func.func @transform_1(%arg0: i32) -> (i32, i32) {
    %c0_i32 = arith.constant 0 : i32
    %c0_i32_0 = arith.constant 0 : i32
    %c0_i32_1 = arith.constant 0 : i32
    return %c0_i32, %c0_i32_0 : i32, i32
  }
  func.func @transform_2(%arg0: i32) -> (i32, i32) {
    %c0_i32 = arith.constant 0 : i32
    %c0_i32_0 = arith.constant 0 : i32
    return %c0_i32, %arg0 : i32, i32
  }
  func.func @transform_3(%arg0: i32) -> (i32, i32) {
    %c0_i32 = arith.constant 0 : i32
    %c0_i32_0 = arith.constant 0 : i32
    return %c0_i32, %arg0 : i32, i32
  }
  func.func @transform_4(%arg0: i32) -> (i32, i32, i32) {
    %c0_i32 = arith.constant 0 : i32
    %c0_i32_0 = arith.constant 0 : i32
    %c0_i32_1 = arith.constant 0 : i32
    return %arg0, %c0_i32, %c0_i32_0 : i32, i32, i32
  }
}

</mosaic_0001>

<llo_original>
// kernel: run.1
$region0: #{run.1}
  #allocation0 [shape = 'u32[]', space=smem, size = 0x4, offset = 0x4, fixed_abs, tag = 'smem constant byte address 0x4 - core index']
  #allocation1 [shape = 'u32[72,128]{1,0:T(1,128)}', space=vmem, size = 0x9000, scoped, tag = 'internal scratch']
  %s0 = inlined_call_operand.vmem [shape: f32[16,16], index: 0, kind: input, shape index: {}]
  %s1 = inlined_call_operand.vmem [shape: f32[128,128], index: 1, kind: input, shape index: {}]
  %s2 = inlined_call_operand.vmem [shape: f32[16,128], index: 2, kind: input, shape index: {}]
  %s3 = inlined_call_operand.vmem [shape: f32[16,128], index: 3, kind: input, shape index: {}]
  %s4 = inlined_call_operand.vmem [shape: f32[1,1,128], index: 4, kind: output, shape index: {}]
  %s5 = sld [smem:[#allocation0]]
  $region26: #{run.1} parent=0
    _
  %s7 = ssub.s32 1, %s5
  %s8 = scalar_select 0, %s7, %s5
  // Predicated region
  $region2: #{run.1} parent=0 // pred_check
    _
  $region3: #{run.1} parent=0 // pred_check_branch
    %10 = sbr.rel (0) target = $region5
  $region4: #{run.1} parent=0 // pred_region
    _
  $region5: #{run.1} parent=0 // pred_fallthru
    _
  // Predicated region
  $region6: #{run.1} parent=0 // pred_check
    _
  $region7: #{run.1} parent=0 // pred_check_branch
    %12 = sbr.rel (0) target = $region9
  $region8: #{run.1} parent=0 // pred_region
    _
  $region9: #{run.1} parent=0 // pred_fallthru
    _
  // Predicated region
  $region10: #{run.1} parent=0 // pred_check
    _
  $region11: #{run.1} parent=0 // pred_check_branch
    %14 = sbr.rel (0) target = $region13
  $region12: #{run.1} parent=0 // pred_region
    _
  $region13: #{run.1} parent=0 // pred_fallthru
    _
  // Predicated region
  $region14: #{run.1} parent=0 // pred_check
    _
  $region15: #{run.1} parent=0 // pred_check_branch
    %16 = sbr.rel (0) target = $region17
  $region16: #{run.1} parent=0 // pred_region
    _
  $region17: #{run.1} parent=0 // pred_fallthru
    _
  %v17 = vld [vmem:[%s2] sm:$0xff]
  %v18 = vld [vmem:[%s2 + $0x8] sm:$0xff]
  %v19 = vld [vmem:[%s3] sm:$0xff]
  %v20 = vld [vmem:[%s3 + $0x8] sm:$0xff]
  %v21 = vld [vmem:[%s0] sm:$0xff]
  %v22 = vld [vmem:[%s0 + $0x8] sm:$0xff]
  %v23 = vld [vmem:[%s1] sm:$0xff]
  %v24 = vld [vmem:[%s1 + $0x8] sm:$0xff]
  %v25 = vld [vmem:[%s1 + $0x10] sm:$0xff]
  %v26 = vld [vmem:[%s1 + $0x18] sm:$0xff]
  %v27 = vld [vmem:[%s1 + $0x20] sm:$0xff]
  %v28 = vld [vmem:[%s1 + $0x28] sm:$0xff]
  %v29 = vld [vmem:[%s1 + $0x30] sm:$0xff]
  %v30 = vld [vmem:[%s1 + $0x38] sm:$0xff]
  %v31 = vld [vmem:[%s1 + $0x40] sm:$0xff]
  %v32 = vld [vmem:[%s1 + $0x48] sm:$0xff]
  %v33 = vld [vmem:[%s1 + $0x50] sm:$0xff]
  %v34 = vld [vmem:[%s1 + $0x58] sm:$0xff]
  %v35 = vld [vmem:[%s1 + $0x60] sm:$0xff]
  %v36 = vld [vmem:[%s1 + $0x68] sm:$0xff]
  %v37 = vld [vmem:[%s1 + $0x70] sm:$0xff]
  %v38 = vld [vmem:[%s1 + $0x78] sm:$0xff]
  %vm39 = vcmask 130048
  %v41 = vsel %vm39, %v21, 0
  %v44 = vsel %vm39, %v22, 0
  %46 = vmatpush.msra.mxu0 0.0
  %47 = vmatpush.msra.mxu0 0.0
  %48 = vmatpush.msra.mxu0 0.0
  %49 = vmatpush.msra.mxu0 0.0
  %50 = vmatpush.msra.mxu0 0.0
  %51 = vmatpush.msra.mxu0 0.0
  %52 = vmatpush.msra.mxu0 0.0
  %53 = vmatpush.msra.mxu0 0.0
  %54 = vmatpush.msra.mxu0 0.0
  %55 = vmatpush.msra.mxu0 0.0
  %56 = vmatpush.msra.mxu0 0.0
  %57 = vmatpush.msra.mxu0 0.0
  %58 = vmatpush.msra.mxu0 0.0
  %59 = vmatpush.msra.mxu0 0.0
  %v60 = vand.u32 %v18, 4294901760
  %61 = vmatpush.msra.mxu0 %v60
  %v62 = vand.u32 %v17, 4294901760
  %63 = vmatpush.msra.mxu0 %v62
  %v64 = vand.u32 %v41, 4294901760
  %v65 = vsub.f32 %v41, %v64
  %v66 = vand.u32 %v65, 4294901760
  %v67 = vsub.f32 %v65, %v66
  %v68 = vand.u32 %v67, 4294901760
  %69 = vmatmul.f32.gmra.mxu0 %v68
  %v70 = vpop.f32.mrf.mxu0
  %v71 = vadd.f32 0.0, %v70
  %v72 = vand.u32 %v44, 4294901760
  %v73 = vsub.f32 %v44, %v72
  %v74 = vand.u32 %v73, 4294901760
  %v75 = vsub.f32 %v73, %v74
  %v76 = vand.u32 %v75, 4294901760
  %77 = vmatmul.f32.gmra.mxu0 %v76
  %v78 = vpop.f32.mrf.mxu0
  %v79 = vadd.f32 0.0, %v78
  %80 = vdwg.mxu0
  %81 = vmatpush.msra.mxu0 0.0
  %82 = vmatpush.msra.mxu0 0.0
  %83 = vmatpush.msra.mxu0 0.0
  %84 = vmatpush.msra.mxu0 0.0
  %85 = vmatpush.msra.mxu0 0.0
  %86 = vmatpush.msra.mxu0 0.0
  %87 = vmatpush.msra.mxu0 0.0
  %88 = vmatpush.msra.mxu0 0.0
  %89 = vmatpush.msra.mxu0 0.0
  %90 = vmatpush.msra.mxu0 0.0
  %91 = vmatpush.msra.mxu0 0.0
  %92 = vmatpush.msra.mxu0 0.0
  %93 = vmatpush.msra.mxu0 0.0
  %94 = vmatpush.msra.mxu0 0.0
  %v95 = vand.u32 %v18, 4294901760
  %v96 = vsub.f32 %v18, %v95
  %v97 = vand.u32 %v96, 4294901760
  %v98 = vsub.f32 %v96, %v97
  %v99 = vand.u32 %v98, 4294901760
  %100 = vmatpush.msra.mxu0 %v99
  %v101 = vand.u32 %v17, 4294901760
  %v102 = vsub.f32 %v17, %v101
  %v103 = vand.u32 %v102, 4294901760
  %v104 = vsub.f32 %v102, %v103
  %v105 = vand.u32 %v104, 4294901760
  %106 = vmatpush.msra.mxu0 %v105
  %v107 = vand.u32 %v41, 4294901760
  %108 = vmatmul.f32.gmra.mxu0 %v107
  %v109 = vpop.f32.mrf.mxu0
  %v110 = vadd.f32 %v71, %v109
  %v111 = vand.u32 %v44, 4294901760
  %112 = vmatmul.f32.gmra.mxu0 %v111
  %v113 = vpop.f32.mrf.mxu0
  %v114 = vadd.f32 %v79, %v113
  %115 = vdwg.mxu0
  %116 = vmatpush.msra.mxu0 0.0
  %117 = vmatpush.msra.mxu0 0.0
  %118 = vmatpush.msra.mxu0 0.0
  %119 = vmatpush.msra.mxu0 0.0
  %120 = vmatpush.msra.mxu0 0.0
  %121 = vmatpush.msra.mxu0 0.0
  %122 = vmatpush.msra.mxu0 0.0
  %123 = vmatpush.msra.mxu0 0.0
  %124 = vmatpush.msra.mxu0 0.0
  %125 = vmatpush.msra.mxu0 0.0
  %126 = vmatpush.msra.mxu0 0.0
  %127 = vmatpush.msra.mxu0 0.0
  %128 = vmatpush.msra.mxu0 0.0
  %129 = vmatpush.msra.mxu0 0.0
  %v130 = vand.u32 %v18, 4294901760
  %v131 = vsub.f32 %v18, %v130
  %132 = vmatpush.msra.mxu0 %v131
  %v133 = vand.u32 %v17, 4294901760
  %v134 = vsub.f32 %v17, %v133
  %135 = vmatpush.msra.mxu0 %v134
  %v136 = vand.u32 %v41, 4294901760
  %v137 = vsub.f32 %v41, %v136
  %138 = vmatmul.f32.gmra.mxu0 %v137
  %v139 = vpop.f32.mrf.mxu0
  %v140 = vadd.f32 %v110, %v139
  %v141 = vand.u32 %v44, 4294901760
  %v142 = vsub.f32 %v44, %v141
  %143 = vmatmul.f32.gmra.mxu0 %v142
  %v144 = vpop.f32.mrf.mxu0
  %v145 = vadd.f32 %v114, %v144
  %146 = vdwg.mxu0
  %147 = vmatpush.msra.mxu0 0.0
  %148 = vmatpush.msra.mxu0 0.0
  %149 = vmatpush.msra.mxu0 0.0
  %150 = vmatpush.msra.mxu0 0.0
  %151 = vmatpush.msra.mxu0 0.0
  %152 = vmatpush.msra.mxu0 0.0
  %153 = vmatpush.msra.mxu0 0.0
  %154 = vmatpush.msra.mxu0 0.0
  %155 = vmatpush.msra.mxu0 0.0
  %156 = vmatpush.msra.mxu0 0.0
  %157 = vmatpush.msra.mxu0 0.0
  %158 = vmatpush.msra.mxu0 0.0
  %159 = vmatpush.msra.mxu0 0.0
  %160 = vmatpush.msra.mxu0 0.0
  %v161 = vand.u32 %v18, 4294901760
  %162 = vmatpush.msra.mxu0 %v161
  %v163 = vand.u32 %v17, 4294901760
  %164 = vmatpush.msra.mxu0 %v163
  %v165 = vand.u32 %v41, 4294901760
  %v166 = vsub.f32 %v41, %v165
  %v167 = vand.u32 %v166, 4294901760
  %168 = vmatmul.f32.gmra.mxu0 %v167
  %v169 = vpop.f32.mrf.mxu0
  %v170 = vadd.f32 %v140, %v169
  %v171 = vand.u32 %v44, 4294901760
  %v172 = vsub.f32 %v44, %v171
  %v173 = vand.u32 %v172, 4294901760
  %174 = vmatmul.f32.gmra.mxu0 %v173
  %v175 = vpop.f32.mrf.mxu0
  %v176 = vadd.f32 %v145, %v175
  %177 = vdwg.mxu0
  %178 = vmatpush.msra.mxu0 0.0
  %179 = vmatpush.msra.mxu0 0.0
  %180 = vmatpush.msra.mxu0 0.0
  %181 = vmatpush.msra.mxu0 0.0
  %182 = vmatpush.msra.mxu0 0.0
  %183 = vmatpush.msra.mxu0 0.0
  %184 = vmatpush.msra.mxu0 0.0
  %185 = vmatpush.msra.mxu0 0.0
  %186 = vmatpush.msra.mxu0 0.0
  %187 = vmatpush.msra.mxu0 0.0
  %188 = vmatpush.msra.mxu0 0.0
  %189 = vmatpush.msra.mxu0 0.0
  %190 = vmatpush.msra.mxu0 0.0
  %191 = vmatpush.msra.mxu0 0.0
  %v192 = vand.u32 %v18, 4294901760
  %v193 = vsub.f32 %v18, %v192
  %v194 = vand.u32 %v193, 4294901760
  %195 = vmatpush.msra.mxu0 %v194
  %v196 = vand.u32 %v17, 4294901760
  %v197 = vsub.f32 %v17, %v196
  %v198 = vand.u32 %v197, 4294901760
  %199 = vmatpush.msra.mxu0 %v198
  %v200 = vand.u32 %v41, 4294901760
  %201 = vmatmul.f32.gmra.mxu0 %v200
  %v202 = vpop.f32.mrf.mxu0
  %v203 = vadd.f32 %v170, %v202
  %v204 = vand.u32 %v44, 4294901760
  %205 = vmatmul.f32.gmra.mxu0 %v204
  %v206 = vpop.f32.mrf.mxu0
  %v207 = vadd.f32 %v176, %v206
  %208 = vdwg.mxu0
  %209 = vmatpush.msra.mxu0 0.0
  %210 = vmatpush.msra.mxu0 0.0
  %211 = vmatpush.msra.mxu0 0.0
  %212 = vmatpush.msra.mxu0 0.0
  %213 = vmatpush.msra.mxu0 0.0
  %214 = vmatpush.msra.mxu0 0.0
  %215 = vmatpush.msra.mxu0 0.0
  %216 = vmatpush.msra.mxu0 0.0
  %217 = vmatpush.msra.mxu0 0.0
  %218 = vmatpush.msra.mxu0 0.0
  %219 = vmatpush.msra.mxu0 0.0
  %220 = vmatpush.msra.mxu0 0.0
  %221 = vmatpush.msra.mxu0 0.0
  %222 = vmatpush.msra.mxu0 0.0
  %v223 = vand.u32 %v18, 4294901760
  %224 = vmatpush.msra.mxu0 %v223
  %v225 = vand.u32 %v17, 4294901760
  %226 = vmatpush.msra.mxu0 %v225
  %v227 = vand.u32 %v41, 4294901760
  %228 = vmatmul.f32.gmra.mxu0 %v227
  %v229 = vpop.f32.mrf.mxu0
  %v230 = vadd.f32 %v203, %v229
  %v231 = vand.u32 %v44, 4294901760
  %232 = vmatmul.f32.gmra.mxu0 %v231
  %v233 = vpop.f32.mrf.mxu0
  %v234 = vadd.f32 %v207, %v233
  %235 = vdwg.mxu0
  %v236 = vand.u32 %v38, 4294901760
  %237 = vmatpush.msra.mxu0 %v236
  %v238 = vand.u32 %v37, 4294901760
  %239 = vmatpush.msra.mxu0 %v238
  %v240 = vand.u32 %v36, 4294901760
  %241 = vmatpush.msra.mxu0 %v240
  %v242 = vand.u32 %v35, 4294901760
  %243 = vmatpush.msra.mxu0 %v242
  %v244 = vand.u32 %v34, 4294901760
  %245 = vmatpush.msra.mxu0 %v244
  %v246 = vand.u32 %v33, 4294901760
  %247 = vmatpush.msra.mxu0 %v246
  %v248 = vand.u32 %v32, 4294901760
  %249 = vmatpush.msra.mxu0 %v248
  %v250 = vand.u32 %v31, 4294901760
  %251 = vmatpush.msra.mxu0 %v250
  %v252 = vand.u32 %v30, 4294901760
  %253 = vmatpush.msra.mxu0 %v252
  %v254 = vand.u32 %v29, 4294901760
  %255 = vmatpush.msra.mxu0 %v254
  %v256 = vand.u32 %v28, 4294901760
  %257 = vmatpush.msra.mxu0 %v256
  %v258 = vand.u32 %v27, 4294901760
  %259 = vmatpush.msra.mxu0 %v258
  %v260 = vand.u32 %v26, 4294901760
  %261 = vmatpush.msra.mxu0 %v260
  %v262 = vand.u32 %v25, 4294901760
  %263 = vmatpush.msra.mxu0 %v262
  %v264 = vand.u32 %v24, 4294901760
  %265 = vmatpush.msra.mxu0 %v264
  %v266 = vand.u32 %v23, 4294901760
  %267 = vmatpush.msra.mxu0 %v266
  %v268 = vand.u32 %v230, 4294901760
  %v269 = vsub.f32 %v230, %v268
  %v270 = vand.u32 %v269, 4294901760
  %v271 = vsub.f32 %v269, %v270
  %v272 = vand.u32 %v271, 4294901760
  %273 = vmatmul.f32.gmra.mxu0 %v272
  %v274 = vpop.f32.mrf.mxu0
  %v275 = vadd.f32 0.0, %v274
  %v276 = vand.u32 %v234, 4294901760
  %v277 = vsub.f32 %v234, %v276
  %v278 = vand.u32 %v277, 4294901760
  %v279 = vsub.f32 %v277, %v278
  %v280 = vand.u32 %v279, 4294901760
  %281 = vmatmul.f32.gmra.mxu0 %v280
  %v282 = vpop.f32.mrf.mxu0
  %v283 = vadd.f32 0.0, %v282
  %284 = vdwg.mxu0
  %v285 = vand.u32 %v38, 4294901760
  %v286 = vsub.f32 %v38, %v285
  %v287 = vand.u32 %v286, 4294901760
  %v288 = vsub.f32 %v286, %v287
  %v289 = vand.u32 %v288, 4294901760
  %290 = vmatpush.msra.mxu0 %v289
  %v291 = vand.u32 %v37, 4294901760
  %v292 = vsub.f32 %v37, %v291
  %v293 = vand.u32 %v292, 4294901760
  %v294 = vsub.f32 %v292, %v293
  %v295 = vand.u32 %v294, 4294901760
  %296 = vmatpush.msra.mxu0 %v295
  %v297 = vand.u32 %v36, 4294901760
  %v298 = vsub.f32 %v36, %v297
  %v299 = vand.u32 %v298, 4294901760
  %v300 = vsub.f32 %v298, %v299
  %v301 = vand.u32 %v300, 4294901760
  %302 = vmatpush.msra.mxu0 %v301
  %v303 = vand.u32 %v35, 4294901760
  %v304 = vsub.f32 %v35, %v303
  %v305 = vand.u32 %v304, 4294901760
  %v306 = vsub.f32 %v304, %v305
  %v307 = vand.u32 %v306, 4294901760
  %308 = vmatpush.msra.mxu0 %v307
  %v309 = vand.u32 %v34, 4294901760
  %v310 = vsub.f32 %v34, %v309
  %v311 = vand.u32 %v310, 4294901760
  %v312 = vsub.f32 %v310, %v311
  %v313 = vand.u32 %v312, 4294901760
  %314 = vmatpush.msra.mxu0 %v313
  %v315 = vand.u32 %v33, 4294901760
  %v316 = vsub.f32 %v33, %v315
  %v317 = vand.u32 %v316, 4294901760
  %v318 = vsub.f32 %v316, %v317
  %v319 = vand.u32 %v318, 4294901760
  %320 = vmatpush.msra.mxu0 %v319
  %v321 = vand.u32 %v32, 4294901760
  %v322 = vsub.f32 %v32, %v321
  %v323 = vand.u32 %v322, 4294901760
  %v324 = vsub.f32 %v322, %v323
  %v325 = vand.u32 %v324, 4294901760
  %326 = vmatpush.msra.mxu0 %v325
  %v327 = vand.u32 %v31, 4294901760
  %v328 = vsub.f32 %v31, %v327
  %v329 = vand.u32 %v328, 4294901760
  %v330 = vsub.f32 %v328, %v329
  %v331 = vand.u32 %v330, 4294901760
  %332 = vmatpush.msra.mxu0 %v331
  %v333 = vand.u32 %v30, 4294901760
  %v334 = vsub.f32 %v30, %v333
  %v335 = vand.u32 %v334, 4294901760
  %v336 = vsub.f32 %v334, %v335
  %v337 = vand.u32 %v336, 4294901760
  %338 = vmatpush.msra.mxu0 %v337
  %v339 = vand.u32 %v29, 4294901760
  %v340 = vsub.f32 %v29, %v339
  %v341 = vand.u32 %v340, 4294901760
  %v342 = vsub.f32 %v340, %v341
  %v343 = vand.u32 %v342, 4294901760
  %344 = vmatpush.msra.mxu0 %v343
  %v345 = vand.u32 %v28, 4294901760
  %v346 = vsub.f32 %v28, %v345
  %v347 = vand.u32 %v346, 4294901760
  %v348 = vsub.f32 %v346, %v347
  %v349 = vand.u32 %v348, 4294901760
  %350 = vmatpush.msra.mxu0 %v349
  %v351 = vand.u32 %v27, 4294901760
  %v352 = vsub.f32 %v27, %v351
  %v353 = vand.u32 %v352, 4294901760
  %v354 = vsub.f32 %v352, %v353
  %v355 = vand.u32 %v354, 4294901760
  %356 = vmatpush.msra.mxu0 %v355
  %v357 = vand.u32 %v26, 4294901760
  %v358 = vsub.f32 %v26, %v357
  %v359 = vand.u32 %v358, 4294901760
  %v360 = vsub.f32 %v358, %v359
  %v361 = vand.u32 %v360, 4294901760
  %362 = vmatpush.msra.mxu0 %v361
  %v363 = vand.u32 %v25, 4294901760
  %v364 = vsub.f32 %v25, %v363
  %v365 = vand.u32 %v364, 4294901760
  %v366 = vsub.f32 %v364, %v365
  %v367 = vand.u32 %v366, 4294901760
  %368 = vmatpush.msra.mxu0 %v367
  %v369 = vand.u32 %v24, 4294901760
  %v370 = vsub.f32 %v24, %v369
  %v371 = vand.u32 %v370, 4294901760
  %v372 = vsub.f32 %v370, %v371
  %v373 = vand.u32 %v372, 4294901760
  %374 = vmatpush.msra.mxu0 %v373
  %v375 = vand.u32 %v23, 4294901760
  %v376 = vsub.f32 %v23, %v375
  %v377 = vand.u32 %v376, 4294901760
  %v378 = vsub.f32 %v376, %v377
  %v379 = vand.u32 %v378, 4294901760
  %380 = vmatpush.msra.mxu0 %v379
  %v381 = vand.u32 %v230, 4294901760
  %382 = vmatmul.f32.gmra.mxu0 %v381
  %v383 = vpop.f32.mrf.mxu0
  %v384 = vadd.f32 %v275, %v383
  %v385 = vand.u32 %v234, 4294901760
  %386 = vmatmul.f32.gmra.mxu0 %v385
  %v387 = vpop.f32.mrf.mxu0
  %v388 = vadd.f32 %v283, %v387
  %389 = vdwg.mxu0
  %v390 = vand.u32 %v38, 4294901760
  %v391 = vsub.f32 %v38, %v390
  %392 = vmatpush.msra.mxu0 %v391
  %v393 = vand.u32 %v37, 4294901760
  %v394 = vsub.f32 %v37, %v393
  %395 = vmatpush.msra.mxu0 %v394
  %v396 = vand.u32 %v36, 4294901760
  %v397 = vsub.f32 %v36, %v396
  %398 = vmatpush.msra.mxu0 %v397
  %v399 = vand.u32 %v35, 4294901760
  %v400 = vsub.f32 %v35, %v399
  %401 = vmatpush.msra.mxu0 %v400
  %v402 = vand.u32 %v34, 4294901760
  %v403 = vsub.f32 %v34, %v402
  %404 = vmatpush.msra.mxu0 %v403
  %v405 = vand.u32 %v33, 4294901760
  %v406 = vsub.f32 %v33, %v405
  %407 = vmatpush.msra.mxu0 %v406
  %v408 = vand.u32 %v32, 4294901760
  %v409 = vsub.f32 %v32, %v408
  %410 = vmatpush.msra.mxu0 %v409
  %v411 = vand.u32 %v31, 4294901760
  %v412 = vsub.f32 %v31, %v411
  %413 = vmatpush.msra.mxu0 %v412
  %v414 = vand.u32 %v30, 4294901760
  %v415 = vsub.f32 %v30, %v414
  %416 = vmatpush.msra.mxu0 %v415
  %v417 = vand.u32 %v29, 4294901760
  %v418 = vsub.f32 %v29, %v417
  %419 = vmatpush.msra.mxu0 %v418
  %v420 = vand.u32 %v28, 4294901760
  %v421 = vsub.f32 %v28, %v420
  %422 = vmatpush.msra.mxu0 %v421
  %v423 = vand.u32 %v27, 4294901760
  %v424 = vsub.f32 %v27, %v423
  %425 = vmatpush.msra.mxu0 %v424
  %v426 = vand.u32 %v26, 4294901760
  %v427 = vsub.f32 %v26, %v426
  %428 = vmatpush.msra.mxu0 %v427
  %v429 = vand.u32 %v25, 4294901760
  %v430 = vsub.f32 %v25, %v429
  %431 = vmatpush.msra.mxu0 %v430
  %v432 = vand.u32 %v24, 4294901760
  %v433 = vsub.f32 %v24, %v432
  %434 = vmatpush.msra.mxu0 %v433
  %v435 = vand.u32 %v23, 4294901760
  %v436 = vsub.f32 %v23, %v435
  %437 = vmatpush.msra.mxu0 %v436
  %v438 = vand.u32 %v230, 4294901760
  %v439 = vsub.f32 %v230, %v438
  %440 = vmatmul.f32.gmra.mxu0 %v439
  %v441 = vpop.f32.mrf.mxu0
  %v442 = vadd.f32 %v384, %v441
  %v443 = vand.u32 %v234, 4294901760
  %v444 = vsub.f32 %v234, %v443
  %445 = vmatmul.f32.gmra.mxu0 %v444
  %v446 = vpop.f32.mrf.mxu0
  %v447 = vadd.f32 %v388, %v446
  %448 = vdwg.mxu0
  %v449 = vand.u32 %v38, 4294901760
  %450 = vmatpush.msra.mxu0 %v449
  %v451 = vand.u32 %v37, 4294901760
  %452 = vmatpush.msra.mxu0 %v451
  %v453 = vand.u32 %v36, 4294901760
  %454 = vmatpush.msra.mxu0 %v453
  %v455 = vand.u32 %v35, 4294901760
  %456 = vmatpush.msra.mxu0 %v455
  %v457 = vand.u32 %v34, 4294901760
  %458 = vmatpush.msra.mxu0 %v457
  %v459 = vand.u32 %v33, 4294901760
  %460 = vmatpush.msra.mxu0 %v459
  %v461 = vand.u32 %v32, 4294901760
  %462 = vmatpush.msra.mxu0 %v461
  %v463 = vand.u32 %v31, 4294901760
  %464 = vmatpush.msra.mxu0 %v463
  %v465 = vand.u32 %v30, 4294901760
  %466 = vmatpush.msra.mxu0 %v465
  %v467 = vand.u32 %v29, 4294901760
  %468 = vmatpush.msra.mxu0 %v467
  %v469 = vand.u32 %v28, 4294901760
  %470 = vmatpush.msra.mxu0 %v469
  %v471 = vand.u32 %v27, 4294901760
  %472 = vmatpush.msra.mxu0 %v471
  %v473 = vand.u32 %v26, 4294901760
  %474 = vmatpush.msra.mxu0 %v473
  %v475 = vand.u32 %v25, 4294901760
  %476 = vmatpush.msra.mxu0 %v475
  %v477 = vand.u32 %v24, 4294901760
  %478 = vmatpush.msra.mxu0 %v477
  %v479 = vand.u32 %v23, 4294901760
  %480 = vmatpush.msra.mxu0 %v479
  %v481 = vand.u32 %v230, 4294901760
  %v482 = vsub.f32 %v230, %v481
  %v483 = vand.u32 %v482, 4294901760
  %484 = vmatmul.f32.gmra.mxu0 %v483
  %v485 = vpop.f32.mrf.mxu0
  %v486 = vadd.f32 %v442, %v485
  %v487 = vand.u32 %v234, 4294901760
  %v488 = vsub.f32 %v234, %v487
  %v489 = vand.u32 %v488, 4294901760
  %490 = vmatmul.f32.gmra.mxu0 %v489
  %v491 = vpop.f32.mrf.mxu0
  %v492 = vadd.f32 %v447, %v491
  %493 = vdwg.mxu0
  %v494 = vand.u32 %v38, 4294901760
  %v495 = vsub.f32 %v38, %v494
  %v496 = vand.u32 %v495, 4294901760
  %497 = vmatpush.msra.mxu0 %v496
  %v498 = vand.u32 %v37, 4294901760
  %v499 = vsub.f32 %v37, %v498
  %v500 = vand.u32 %v499, 4294901760
  %501 = vmatpush.msra.mxu0 %v500
  %v502 = vand.u32 %v36, 4294901760
  %v503 = vsub.f32 %v36, %v502
  %v504 = vand.u32 %v503, 4294901760
  %505 = vmatpush.msra.mxu0 %v504
  %v506 = vand.u32 %v35, 4294901760
  %v507 = vsub.f32 %v35, %v506
  %v508 = vand.u32 %v507, 4294901760
  %509 = vmatpush.msra.mxu0 %v508
  %v510 = vand.u32 %v34, 4294901760
  %v511 = vsub.f32 %v34, %v510
  %v512 = vand.u32 %v511, 4294901760
  %513 = vmatpush.msra.mxu0 %v512
  %v514 = vand.u32 %v33, 4294901760
  %v515 = vsub.f32 %v33, %v514
  %v516 = vand.u32 %v515, 4294901760
  %517 = vmatpush.msra.mxu0 %v516
  %v518 = vand.u32 %v32, 4294901760
  %v519 = vsub.f32 %v32, %v518
  %v520 = vand.u32 %v519, 4294901760
  %521 = vmatpush.msra.mxu0 %v520
  %v522 = vand.u32 %v31, 4294901760
  %v523 = vsub.f32 %v31, %v522
  %v524 = vand.u32 %v523, 4294901760
  %525 = vmatpush.msra.mxu0 %v524
  %v526 = vand.u32 %v30, 4294901760
  %v527 = vsub.f32 %v30, %v526
  %v528 = vand.u32 %v527, 4294901760
  %529 = vmatpush.msra.mxu0 %v528
  %v530 = vand.u32 %v29, 4294901760
  %v531 = vsub.f32 %v29, %v530
  %v532 = vand.u32 %v531, 4294901760
  %533 = vmatpush.msra.mxu0 %v532
  %v534 = vand.u32 %v28, 4294901760
  %v535 = vsub.f32 %v28, %v534
  %v536 = vand.u32 %v535, 4294901760
  %537 = vmatpush.msra.mxu0 %v536
  %v538 = vand.u32 %v27, 4294901760
  %v539 = vsub.f32 %v27, %v538
  %v540 = vand.u32 %v539, 4294901760
  %541 = vmatpush.msra.mxu0 %v540
  %v542 = vand.u32 %v26, 4294901760
  %v543 = vsub.f32 %v26, %v542
  %v544 = vand.u32 %v543, 4294901760
  %545 = vmatpush.msra.mxu0 %v544
  %v546 = vand.u32 %v25, 4294901760
  %v547 = vsub.f32 %v25, %v546
  %v548 = vand.u32 %v547, 4294901760
  %549 = vmatpush.msra.mxu0 %v548
  %v550 = vand.u32 %v24, 4294901760
  %v551 = vsub.f32 %v24, %v550
  %v552 = vand.u32 %v551, 4294901760
  %553 = vmatpush.msra.mxu0 %v552
  %v554 = vand.u32 %v23, 4294901760
  %v555 = vsub.f32 %v23, %v554
  %v556 = vand.u32 %v555, 4294901760
  %557 = vmatpush.msra.mxu0 %v556
  %v558 = vand.u32 %v230, 4294901760
  %559 = vmatmul.f32.gmra.mxu0 %v558
  %v560 = vpop.f32.mrf.mxu0
  %v561 = vadd.f32 %v486, %v560
  %v562 = vand.u32 %v234, 4294901760
  %563 = vmatmul.f32.gmra.mxu0 %v562
  %v564 = vpop.f32.mrf.mxu0
  %v565 = vadd.f32 %v492, %v564
  %566 = vdwg.mxu0
  %v567 = vand.u32 %v38, 4294901760
  %568 = vmatpush.msra.mxu0 %v567
  %v569 = vand.u32 %v37, 4294901760
  %570 = vmatpush.msra.mxu0 %v569
  %v571 = vand.u32 %v36, 4294901760
  %572 = vmatpush.msra.mxu0 %v571
  %v573 = vand.u32 %v35, 4294901760
  %574 = vmatpush.msra.mxu0 %v573
  %v575 = vand.u32 %v34, 4294901760
  %576 = vmatpush.msra.mxu0 %v575
  %v577 = vand.u32 %v33, 4294901760
  %578 = vmatpush.msra.mxu0 %v577
  %v579 = vand.u32 %v32, 4294901760
  %580 = vmatpush.msra.mxu0 %v579
  %v581 = vand.u32 %v31, 4294901760
  %582 = vmatpush.msra.mxu0 %v581
  %v583 = vand.u32 %v30, 4294901760
  %584 = vmatpush.msra.mxu0 %v583
  %v585 = vand.u32 %v29, 4294901760
  %586 = vmatpush.msra.mxu0 %v585
  %v587 = vand.u32 %v28, 4294901760
  %588 = vmatpush.msra.mxu0 %v587
  %v589 = vand.u32 %v27, 4294901760
  %590 = vmatpush.msra.mxu0 %v589
  %v591 = vand.u32 %v26, 4294901760
  %592 = vmatpush.msra.mxu0 %v591
  %v593 = vand.u32 %v25, 4294901760
  %594 = vmatpush.msra.mxu0 %v593
  %v595 = vand.u32 %v24, 4294901760
  %596 = vmatpush.msra.mxu0 %v595
  %v597 = vand.u32 %v23, 4294901760
  %598 = vmatpush.msra.mxu0 %v597
  %v599 = vand.u32 %v230, 4294901760
  %600 = vmatmul.f32.gmra.mxu0 %v599
  %v601 = vpop.f32.mrf.mxu0
  %v602 = vadd.f32 %v561, %v601
  %v603 = vand.u32 %v234, 4294901760
  %604 = vmatmul.f32.gmra.mxu0 %v603
  %v605 = vpop.f32.mrf.mxu0
  %v606 = vadd.f32 %v565, %v605
  %607 = vdwg.mxu0
  %608 = vmatpush.msra.mxu0 0.0
  %609 = vmatpush.msra.mxu0 0.0
  %610 = vmatpush.msra.mxu0 0.0
  %611 = vmatpush.msra.mxu0 0.0
  %612 = vmatpush.msra.mxu0 0.0
  %613 = vmatpush.msra.mxu0 0.0
  %614 = vmatpush.msra.mxu0 0.0
  %615 = vmatpush.msra.mxu0 0.0
  %616 = vmatpush.msra.mxu0 0.0
  %617 = vmatpush.msra.mxu0 0.0
  %618 = vmatpush.msra.mxu0 0.0
  %619 = vmatpush.msra.mxu0 0.0
  %620 = vmatpush.msra.mxu0 0.0
  %621 = vmatpush.msra.mxu0 0.0
  %v622 = vand.u32 %v20, 4294901760
  %623 = vmatpush.msra.mxu0 %v622
  %v624 = vand.u32 %v19, 4294901760
  %625 = vmatpush.msra.mxu0 %v624
  %v626 = vand.u32 %v41, 4294901760
  %v627 = vsub.f32 %v41, %v626
  %v628 = vand.u32 %v627, 4294901760
  %v629 = vsub.f32 %v627, %v628
  %v630 = vand.u32 %v629, 4294901760
  %631 = vmatmul.f32.gmra.mxu0 %v630
  %v632 = vpop.f32.mrf.mxu0
  %v633 = vadd.f32 0.0, %v632
  %v634 = vand.u32 %v44, 4294901760
  %v635 = vsub.f32 %v44, %v634
  %v636 = vand.u32 %v635, 4294901760
  %v637 = vsub.f32 %v635, %v636
  %v638 = vand.u32 %v637, 4294901760
  %639 = vmatmul.f32.gmra.mxu0 %v638
  %v640 = vpop.f32.mrf.mxu0
  %v641 = vadd.f32 0.0, %v640
  %642 = vdwg.mxu0
  %643 = vmatpush.msra.mxu0 0.0
  %644 = vmatpush.msra.mxu0 0.0
  %645 = vmatpush.msra.mxu0 0.0
  %646 = vmatpush.msra.mxu0 0.0
  %647 = vmatpush.msra.mxu0 0.0
  %648 = vmatpush.msra.mxu0 0.0
  %649 = vmatpush.msra.mxu0 0.0
  %650 = vmatpush.msra.mxu0 0.0
  %651 = vmatpush.msra.mxu0 0.0
  %652 = vmatpush.msra.mxu0 0.0
  %653 = vmatpush.msra.mxu0 0.0
  %654 = vmatpush.msra.mxu0 0.0
  %655 = vmatpush.msra.mxu0 0.0
  %656 = vmatpush.msra.mxu0 0.0
  %v657 = vand.u32 %v20, 4294901760
  %v658 = vsub.f32 %v20, %v657
  %v659 = vand.u32 %v658, 4294901760
  %v660 = vsub.f32 %v658, %v659
  %v661 = vand.u32 %v660, 4294901760
  %662 = vmatpush.msra.mxu0 %v661
  %v663 = vand.u32 %v19, 4294901760
  %v664 = vsub.f32 %v19, %v663
  %v665 = vand.u32 %v664, 4294901760
  %v666 = vsub.f32 %v664, %v665
  %v667 = vand.u32 %v666, 4294901760
  %668 = vmatpush.msra.mxu0 %v667
  %v669 = vand.u32 %v41, 4294901760
  %670 = vmatmul.f32.gmra.mxu0 %v669
  %v671 = vpop.f32.mrf.mxu0
  %v672 = vadd.f32 %v633, %v671
  %v673 = vand.u32 %v44, 4294901760
  %674 = vmatmul.f32.gmra.mxu0 %v673
  %v675 = vpop.f32.mrf.mxu0
  %v676 = vadd.f32 %v641, %v675
  %677 = vdwg.mxu0
  %678 = vmatpush.msra.mxu0 0.0
  %679 = vmatpush.msra.mxu0 0.0
  %680 = vmatpush.msra.mxu0 0.0
  %681 = vmatpush.msra.mxu0 0.0
  %682 = vmatpush.msra.mxu0 0.0
  %683 = vmatpush.msra.mxu0 0.0
  %684 = vmatpush.msra.mxu0 0.0
  %685 = vmatpush.msra.mxu0 0.0
  %686 = vmatpush.msra.mxu0 0.0
  %687 = vmatpush.msra.mxu0 0.0
  %688 = vmatpush.msra.mxu0 0.0
  %689 = vmatpush.msra.mxu0 0.0
  %690 = vmatpush.msra.mxu0 0.0
  %691 = vmatpush.msra.mxu0 0.0
  %v692 = vand.u32 %v20, 4294901760
  %v693 = vsub.f32 %v20, %v692
  %694 = vmatpush.msra.mxu0 %v693
  %v695 = vand.u32 %v19, 4294901760
  %v696 = vsub.f32 %v19, %v695
  %697 = vmatpush.msra.mxu0 %v696
  %v698 = vand.u32 %v41, 4294901760
  %v699 = vsub.f32 %v41, %v698
  %700 = vmatmul.f32.gmra.mxu0 %v699
  %v701 = vpop.f32.mrf.mxu0
  %v702 = vadd.f32 %v672, %v701
  %v703 = vand.u32 %v44, 4294901760
  %v704 = vsub.f32 %v44, %v703
  %705 = vmatmul.f32.gmra.mxu0 %v704
  %v706 = vpop.f32.mrf.mxu0
  %v707 = vadd.f32 %v676, %v706
  %708 = vdwg.mxu0
  %709 = vmatpush.msra.mxu0 0.0
  %710 = vmatpush.msra.mxu0 0.0
  %711 = vmatpush.msra.mxu0 0.0
  %712 = vmatpush.msra.mxu0 0.0
  %713 = vmatpush.msra.mxu0 0.0
  %714 = vmatpush.msra.mxu0 0.0
  %715 = vmatpush.msra.mxu0 0.0
  %716 = vmatpush.msra.mxu0 0.0
  %717 = vmatpush.msra.mxu0 0.0
  %718 = vmatpush.msra.mxu0 0.0
  %719 = vmatpush.msra.mxu0 0.0
  %720 = vmatpush.msra.mxu0 0.0
  %721 = vmatpush.msra.mxu0 0.0
  %722 = vmatpush.msra.mxu0 0.0
  %v723 = vand.u32 %v20, 4294901760
  %724 = vmatpush.msra.mxu0 %v723
  %v725 = vand.u32 %v19, 4294901760
  %726 = vmatpush.msra.mxu0 %v725
  %v727 = vand.u32 %v41, 4294901760
  %v728 = vsub.f32 %v41, %v727
  %v729 = vand.u32 %v728, 4294901760
  %730 = vmatmul.f32.gmra.mxu0 %v729
  %v731 = vpop.f32.mrf.mxu0
  %v732 = vadd.f32 %v702, %v731
  %v733 = vand.u32 %v44, 4294901760
  %v734 = vsub.f32 %v44, %v733
  %v735 = vand.u32 %v734, 4294901760
  %736 = vmatmul.f32.gmra.mxu0 %v735
  %v737 = vpop.f32.mrf.mxu0
  %v738 = vadd.f32 %v707, %v737
  %739 = vdwg.mxu0
  %740 = vmatpush.msra.mxu0 0.0
  %741 = vmatpush.msra.mxu0 0.0
  %742 = vmatpush.msra.mxu0 0.0
  %743 = vmatpush.msra.mxu0 0.0
  %744 = vmatpush.msra.mxu0 0.0
  %745 = vmatpush.msra.mxu0 0.0
  %746 = vmatpush.msra.mxu0 0.0
  %747 = vmatpush.msra.mxu0 0.0
  %748 = vmatpush.msra.mxu0 0.0
  %749 = vmatpush.msra.mxu0 0.0
  %750 = vmatpush.msra.mxu0 0.0
  %751 = vmatpush.msra.mxu0 0.0
  %752 = vmatpush.msra.mxu0 0.0
  %753 = vmatpush.msra.mxu0 0.0
  %v754 = vand.u32 %v20, 4294901760
  %v755 = vsub.f32 %v20, %v754
  %v756 = vand.u32 %v755, 4294901760
  %757 = vmatpush.msra.mxu0 %v756
  %v758 = vand.u32 %v19, 4294901760
  %v759 = vsub.f32 %v19, %v758
  %v760 = vand.u32 %v759, 4294901760
  %761 = vmatpush.msra.mxu0 %v760
  %v762 = vand.u32 %v41, 4294901760
  %763 = vmatmul.f32.gmra.mxu0 %v762
  %v764 = vpop.f32.mrf.mxu0
  %v765 = vadd.f32 %v732, %v764
  %v766 = vand.u32 %v44, 4294901760
  %767 = vmatmul.f32.gmra.mxu0 %v766
  %v768 = vpop.f32.mrf.mxu0
  %v769 = vadd.f32 %v738, %v768
  %770 = vdwg.mxu0
  %771 = vmatpush.msra.mxu0 0.0
  %772 = vmatpush.msra.mxu0 0.0
  %773 = vmatpush.msra.mxu0 0.0
  %774 = vmatpush.msra.mxu0 0.0
  %775 = vmatpush.msra.mxu0 0.0
  %776 = vmatpush.msra.mxu0 0.0
  %777 = vmatpush.msra.mxu0 0.0
  %778 = vmatpush.msra.mxu0 0.0
  %779 = vmatpush.msra.mxu0 0.0
  %780 = vmatpush.msra.mxu0 0.0
  %781 = vmatpush.msra.mxu0 0.0
  %782 = vmatpush.msra.mxu0 0.0
  %783 = vmatpush.msra.mxu0 0.0
  %784 = vmatpush.msra.mxu0 0.0
  %v785 = vand.u32 %v20, 4294901760
  %786 = vmatpush.msra.mxu0 %v785
  %v787 = vand.u32 %v19, 4294901760
  %788 = vmatpush.msra.mxu0 %v787
  %v789 = vand.u32 %v41, 4294901760
  %790 = vmatmul.f32.gmra.mxu0 %v789
  %v791 = vpop.f32.mrf.mxu0
  %v792 = vadd.f32 %v765, %v791
  %v793 = vand.u32 %v44, 4294901760
  %794 = vmatmul.f32.gmra.mxu0 %v793
  %v795 = vpop.f32.mrf.mxu0
  %v796 = vadd.f32 %v769, %v795
  %797 = vdwg.mxu0
  %v798 = vand.u32 %v38, 4294901760
  %799 = vmatpush.msra.mxu0 %v798
  %v800 = vand.u32 %v37, 4294901760
  %801 = vmatpush.msra.mxu0 %v800
  %v802 = vand.u32 %v36, 4294901760
  %803 = vmatpush.msra.mxu0 %v802
  %v804 = vand.u32 %v35, 4294901760
  %805 = vmatpush.msra.mxu0 %v804
  %v806 = vand.u32 %v34, 4294901760
  %807 = vmatpush.msra.mxu0 %v806
  %v808 = vand.u32 %v33, 4294901760
  %809 = vmatpush.msra.mxu0 %v808
  %v810 = vand.u32 %v32, 4294901760
  %811 = vmatpush.msra.mxu0 %v810
  %v812 = vand.u32 %v31, 4294901760
  %813 = vmatpush.msra.mxu0 %v812
  %v814 = vand.u32 %v30, 4294901760
  %815 = vmatpush.msra.mxu0 %v814
  %v816 = vand.u32 %v29, 4294901760
  %817 = vmatpush.msra.mxu0 %v816
  %v818 = vand.u32 %v28, 4294901760
  %819 = vmatpush.msra.mxu0 %v818
  %v820 = vand.u32 %v27, 4294901760
  %821 = vmatpush.msra.mxu0 %v820
  %v822 = vand.u32 %v26, 4294901760
  %823 = vmatpush.msra.mxu0 %v822
  %v824 = vand.u32 %v25, 4294901760
  %825 = vmatpush.msra.mxu0 %v824
  %v826 = vand.u32 %v24, 4294901760
  %827 = vmatpush.msra.mxu0 %v826
  %v828 = vand.u32 %v23, 4294901760
  %829 = vmatpush.msra.mxu0 %v828
  %v830 = vand.u32 %v792, 4294901760
  %v831 = vsub.f32 %v792, %v830
  %v832 = vand.u32 %v831, 4294901760
  %v833 = vsub.f32 %v831, %v832
  %v834 = vand.u32 %v833, 4294901760
  %835 = vmatmul.f32.gmra.mxu0 %v834
  %v836 = vpop.f32.mrf.mxu0
  %v837 = vadd.f32 0.0, %v836
  %v838 = vand.u32 %v796, 4294901760
  %v839 = vsub.f32 %v796, %v838
  %v840 = vand.u32 %v839, 4294901760
  %v841 = vsub.f32 %v839, %v840
  %v842 = vand.u32 %v841, 4294901760
  %843 = vmatmul.f32.gmra.mxu0 %v842
  %v844 = vpop.f32.mrf.mxu0
  %v845 = vadd.f32 0.0, %v844
  %846 = vdwg.mxu0
  %v847 = vand.u32 %v38, 4294901760
  %v848 = vsub.f32 %v38, %v847
  %v849 = vand.u32 %v848, 4294901760
  %v850 = vsub.f32 %v848, %v849
  %v851 = vand.u32 %v850, 4294901760
  %852 = vmatpush.msra.mxu0 %v851
  %v853 = vand.u32 %v37, 4294901760
  %v854 = vsub.f32 %v37, %v853
  %v855 = vand.u32 %v854, 4294901760
  %v856 = vsub.f32 %v854, %v855
  %v857 = vand.u32 %v856, 4294901760
  %858 = vmatpush.msra.mxu0 %v857
  %v859 = vand.u32 %v36, 4294901760
  %v860 = vsub.f32 %v36, %v859
  %v861 = vand.u32 %v860, 4294901760
  %v862 = vsub.f32 %v860, %v861
  %v863 = vand.u32 %v862, 4294901760
  %864 = vmatpush.msra.mxu0 %v863
  %v865 = vand.u32 %v35, 4294901760
  %v866 = vsub.f32 %v35, %v865
  %v867 = vand.u32 %v866, 4294901760
  %v868 = vsub.f32 %v866, %v867
  %v869 = vand.u32 %v868, 4294901760
  %870 = vmatpush.msra.mxu0 %v869
  %v871 = vand.u32 %v34, 4294901760
  %v872 = vsub.f32 %v34, %v871
  %v873 = vand.u32 %v872, 4294901760
  %v874 = vsub.f32 %v872, %v873
  %v875 = vand.u32 %v874, 4294901760
  %876 = vmatpush.msra.mxu0 %v875
  %v877 = vand.u32 %v33, 4294901760
  %v878 = vsub.f32 %v33, %v877
  %v879 = vand.u32 %v878, 4294901760
  %v880 = vsub.f32 %v878, %v879
  %v881 = vand.u32 %v880, 4294901760
  %882 = vmatpush.msra.mxu0 %v881
  %v883 = vand.u32 %v32, 4294901760
  %v884 = vsub.f32 %v32, %v883
  %v885 = vand.u32 %v884, 4294901760
  %v886 = vsub.f32 %v884, %v885
  %v887 = vand.u32 %v886, 4294901760
  %888 = vmatpush.msra.mxu0 %v887
  %v889 = vand.u32 %v31, 4294901760
  %v890 = vsub.f32 %v31, %v889
  %v891 = vand.u32 %v890, 4294901760
  %v892 = vsub.f32 %v890, %v891
  %v893 = vand.u32 %v892, 4294901760
  %894 = vmatpush.msra.mxu0 %v893
  %v895 = vand.u32 %v30, 4294901760
  %v896 = vsub.f32 %v30, %v895
  %v897 = vand.u32 %v896, 4294901760
  %v898 = vsub.f32 %v896, %v897
  %v899 = vand.u32 %v898, 4294901760
  %900 = vmatpush.msra.mxu0 %v899
  %v901 = vand.u32 %v29, 4294901760
  %v902 = vsub.f32 %v29, %v901
  %v903 = vand.u32 %v902, 4294901760
  %v904 = vsub.f32 %v902, %v903
  %v905 = vand.u32 %v904, 4294901760
  %906 = vmatpush.msra.mxu0 %v905
  %v907 = vand.u32 %v28, 4294901760
  %v908 = vsub.f32 %v28, %v907
  %v909 = vand.u32 %v908, 4294901760
  %v910 = vsub.f32 %v908, %v909
  %v911 = vand.u32 %v910, 4294901760
  %912 = vmatpush.msra.mxu0 %v911
  %v913 = vand.u32 %v27, 4294901760
  %v914 = vsub.f32 %v27, %v913
  %v915 = vand.u32 %v914, 4294901760
  %v916 = vsub.f32 %v914, %v915
  %v917 = vand.u32 %v916, 4294901760
  %918 = vmatpush.msra.mxu0 %v917
  %v919 = vand.u32 %v26, 4294901760
  %v920 = vsub.f32 %v26, %v919
  %v921 = vand.u32 %v920, 4294901760
  %v922 = vsub.f32 %v920, %v921
  %v923 = vand.u32 %v922, 4294901760
  %924 = vmatpush.msra.mxu0 %v923
  %v925 = vand.u32 %v25, 4294901760
  %v926 = vsub.f32 %v25, %v925
  %v927 = vand.u32 %v926, 4294901760
  %v928 = vsub.f32 %v926, %v927
  %v929 = vand.u32 %v928, 4294901760
  %930 = vmatpush.msra.mxu0 %v929
  %v931 = vand.u32 %v24, 4294901760
  %v932 = vsub.f32 %v24, %v931
  %v933 = vand.u32 %v932, 4294901760
  %v934 = vsub.f32 %v932, %v933
  %v935 = vand.u32 %v934, 4294901760
  %936 = vmatpush.msra.mxu0 %v935
  %v937 = vand.u32 %v23, 4294901760
  %v938 = vsub.f32 %v23, %v937
  %v939 = vand.u32 %v938, 4294901760
  %v940 = vsub.f32 %v938, %v939
  %v941 = vand.u32 %v940, 4294901760
  %942 = vmatpush.msra.mxu0 %v941
  %v943 = vand.u32 %v792, 4294901760
  %944 = vmatmul.f32.gmra.mxu0 %v943
  %v945 = vpop.f32.mrf.mxu0
  %v946 = vadd.f32 %v837, %v945
  %v947 = vand.u32 %v796, 4294901760
  %948 = vmatmul.f32.gmra.mxu0 %v947
  %v949 = vpop.f32.mrf.mxu0
  %v950 = vadd.f32 %v845, %v949
  %951 = vdwg.mxu0
  %v952 = vand.u32 %v38, 4294901760
  %v953 = vsub.f32 %v38, %v952
  %954 = vmatpush.msra.mxu0 %v953
  %v955 = vand.u32 %v37, 4294901760
  %v956 = vsub.f32 %v37, %v955
  %957 = vmatpush.msra.mxu0 %v956
  %v958 = vand.u32 %v36, 4294901760
  %v959 = vsub.f32 %v36, %v958
  %960 = vmatpush.msra.mxu0 %v959
  %v961 = vand.u32 %v35, 4294901760
  %v962 = vsub.f32 %v35, %v961
  %963 = vmatpush.msra.mxu0 %v962
  %v964 = vand.u32 %v34, 4294901760
  %v965 = vsub.f32 %v34, %v964
  %966 = vmatpush.msra.mxu0 %v965
  %v967 = vand.u32 %v33, 4294901760
  %v968 = vsub.f32 %v33, %v967
  %969 = vmatpush.msra.mxu0 %v968
  %v970 = vand.u32 %v32, 4294901760
  %v971 = vsub.f32 %v32, %v970
  %972 = vmatpush.msra.mxu0 %v971
  %v973 = vand.u32 %v31, 4294901760
  %v974 = vsub.f32 %v31, %v973
  %975 = vmatpush.msra.mxu0 %v974
  %v976 = vand.u32 %v30, 4294901760
  %v977 = vsub.f32 %v30, %v976
  %978 = vmatpush.msra.mxu0 %v977
  %v979 = vand.u32 %v29, 4294901760
  %v980 = vsub.f32 %v29, %v979
  %981 = vmatpush.msra.mxu0 %v980
  %v982 = vand.u32 %v28, 4294901760
  %v983 = vsub.f32 %v28, %v982
  %984 = vmatpush.msra.mxu0 %v983
  %v985 = vand.u32 %v27, 4294901760
  %v986 = vsub.f32 %v27, %v985
  %987 = vmatpush.msra.mxu0 %v986
  %v988 = vand.u32 %v26, 4294901760
  %v989 = vsub.f32 %v26, %v988
  %990 = vmatpush.msra.mxu0 %v989
  %v991 = vand.u32 %v25, 4294901760
  %v992 = vsub.f32 %v25, %v991
  %993 = vmatpush.msra.mxu0 %v992
  %v994 = vand.u32 %v24, 4294901760
  %v995 = vsub.f32 %v24, %v994
  %996 = vmatpush.msra.mxu0 %v995
  %v997 = vand.u32 %v23, 4294901760
  %v998 = vsub.f32 %v23, %v997
  %999 = vmatpush.msra.mxu0 %v998
  %v1000 = vand.u32 %v792, 4294901760
  %v1001 = vsub.f32 %v792, %v1000
  %1002 = vmatmul.f32.gmra.mxu0 %v1001
  %v1003 = vpop.f32.mrf.mxu0
  %v1004 = vadd.f32 %v946, %v1003
  %v1005 = vand.u32 %v796, 4294901760
  %v1006 = vsub.f32 %v796, %v1005
  %1007 = vmatmul.f32.gmra.mxu0 %v1006
  %v1008 = vpop.f32.mrf.mxu0
  %v1009 = vadd.f32 %v950, %v1008
  %1010 = vdwg.mxu0
  %v1011 = vand.u32 %v38, 4294901760
  %1012 = vmatpush.msra.mxu0 %v1011
  %v1013 = vand.u32 %v37, 4294901760
  %1014 = vmatpush.msra.mxu0 %v1013
  %v1015 = vand.u32 %v36, 4294901760
  %1016 = vmatpush.msra.mxu0 %v1015
  %v1017 = vand.u32 %v35, 4294901760
  %1018 = vmatpush.msra.mxu0 %v1017
  %v1019 = vand.u32 %v34, 4294901760
  %1020 = vmatpush.msra.mxu0 %v1019
  %v1021 = vand.u32 %v33, 4294901760
  %1022 = vmatpush.msra.mxu0 %v1021
  %v1023 = vand.u32 %v32, 4294901760
  %1024 = vmatpush.msra.mxu0 %v1023
  %v1025 = vand.u32 %v31, 4294901760
  %1026 = vmatpush.msra.mxu0 %v1025
  %v1027 = vand.u32 %v30, 4294901760
  %1028 = vmatpush.msra.mxu0 %v1027
  %v1029 = vand.u32 %v29, 4294901760
  %1030 = vmatpush.msra.mxu0 %v1029
  %v1031 = vand.u32 %v28, 4294901760
  %1032 = vmatpush.msra.mxu0 %v1031
  %v1033 = vand.u32 %v27, 4294901760
  %1034 = vmatpush.msra.mxu0 %v1033
  %v1035 = vand.u32 %v26, 4294901760
  %1036 = vmatpush.msra.mxu0 %v1035
  %v1037 = vand.u32 %v25, 4294901760
  %1038 = vmatpush.msra.mxu0 %v1037
  %v1039 = vand.u32 %v24, 4294901760
  %1040 = vmatpush.msra.mxu0 %v1039
  %v1041 = vand.u32 %v23, 4294901760
  %1042 = vmatpush.msra.mxu0 %v1041
  %v1043 = vand.u32 %v792, 4294901760
  %v1044 = vsub.f32 %v792, %v1043
  %v1045 = vand.u32 %v1044, 4294901760
  %1046 = vmatmul.f32.gmra.mxu0 %v1045
  %v1047 = vpop.f32.mrf.mxu0
  %v1048 = vadd.f32 %v1004, %v1047
  %v1049 = vand.u32 %v796, 4294901760
  %v1050 = vsub.f32 %v796, %v1049
  %v1051 = vand.u32 %v1050, 4294901760
  %1052 = vmatmul.f32.gmra.mxu0 %v1051
  %v1053 = vpop.f32.mrf.mxu0
  %v1054 = vadd.f32 %v1009, %v1053
  %1055 = vdwg.mxu0
  %v1056 = vand.u32 %v38, 4294901760
  %v1057 = vsub.f32 %v38, %v1056
  %v1058 = vand.u32 %v1057, 4294901760
  %1059 = vmatpush.msra.mxu0 %v1058
  %v1060 = vand.u32 %v37, 4294901760
  %v1061 = vsub.f32 %v37, %v1060
  %v1062 = vand.u32 %v1061, 4294901760
  %1063 = vmatpush.msra.mxu0 %v1062
  %v1064 = vand.u32 %v36, 4294901760
  %v1065 = vsub.f32 %v36, %v1064
  %v1066 = vand.u32 %v1065, 4294901760
  %1067 = vmatpush.msra.mxu0 %v1066
  %v1068 = vand.u32 %v35, 4294901760
  %v1069 = vsub.f32 %v35, %v1068
  %v1070 = vand.u32 %v1069, 4294901760
  %1071 = vmatpush.msra.mxu0 %v1070
  %v1072 = vand.u32 %v34, 4294901760
  %v1073 = vsub.f32 %v34, %v1072
  %v1074 = vand.u32 %v1073, 4294901760
  %1075 = vmatpush.msra.mxu0 %v1074
  %v1076 = vand.u32 %v33, 4294901760
  %v1077 = vsub.f32 %v33, %v1076
  %v1078 = vand.u32 %v1077, 4294901760
  %1079 = vmatpush.msra.mxu0 %v1078
  %v1080 = vand.u32 %v32, 4294901760
  %v1081 = vsub.f32 %v32, %v1080
  %v1082 = vand.u32 %v1081, 4294901760
  %1083 = vmatpush.msra.mxu0 %v1082
  %v1084 = vand.u32 %v31, 4294901760
  %v1085 = vsub.f32 %v31, %v1084
  %v1086 = vand.u32 %v1085, 4294901760
  %1087 = vmatpush.msra.mxu0 %v1086
  %v1088 = vand.u32 %v30, 4294901760
  %v1089 = vsub.f32 %v30, %v1088
  %v1090 = vand.u32 %v1089, 4294901760
  %1091 = vmatpush.msra.mxu0 %v1090
  %v1092 = vand.u32 %v29, 4294901760
  %v1093 = vsub.f32 %v29, %v1092
  %v1094 = vand.u32 %v1093, 4294901760
  %1095 = vmatpush.msra.mxu0 %v1094
  %v1096 = vand.u32 %v28, 4294901760
  %v1097 = vsub.f32 %v28, %v1096
  %v1098 = vand.u32 %v1097, 4294901760
  %1099 = vmatpush.msra.mxu0 %v1098
  %v1100 = vand.u32 %v27, 4294901760
  %v1101 = vsub.f32 %v27, %v1100
  %v1102 = vand.u32 %v1101, 4294901760
  %1103 = vmatpush.msra.mxu0 %v1102
  %v1104 = vand.u32 %v26, 4294901760
  %v1105 = vsub.f32 %v26, %v1104
  %v1106 = vand.u32 %v1105, 4294901760
  %1107 = vmatpush.msra.mxu0 %v1106
  %v1108 = vand.u32 %v25, 4294901760
  %v1109 = vsub.f32 %v25, %v1108
  %v1110 = vand.u32 %v1109, 4294901760
  %1111 = vmatpush.msra.mxu0 %v1110
  %v1112 = vand.u32 %v24, 4294901760
  %v1113 = vsub.f32 %v24, %v1112
  %v1114 = vand.u32 %v1113, 4294901760
  %1115 = vmatpush.msra.mxu0 %v1114
  %v1116 = vand.u32 %v23, 4294901760
  %v1117 = vsub.f32 %v23, %v1116
  %v1118 = vand.u32 %v1117, 4294901760
  %1119 = vmatpush.msra.mxu0 %v1118
  %v1120 = vand.u32 %v792, 4294901760
  %1121 = vmatmul.f32.gmra.mxu0 %v1120
  %v1122 = vpop.f32.mrf.mxu0
  %v1123 = vadd.f32 %v1048, %v1122
  %v1124 = vand.u32 %v796, 4294901760
  %1125 = vmatmul.f32.gmra.mxu0 %v1124
  %v1126 = vpop.f32.mrf.mxu0
  %v1127 = vadd.f32 %v1054, %v1126
  %1128 = vdwg.mxu0
  %v1129 = vand.u32 %v38, 4294901760
  %1130 = vmatpush.msra.mxu0 %v1129
  %v1131 = vand.u32 %v37, 4294901760
  %1132 = vmatpush.msra.mxu0 %v1131
  %v1133 = vand.u32 %v36, 4294901760
  %1134 = vmatpush.msra.mxu0 %v1133
  %v1135 = vand.u32 %v35, 4294901760
  %1136 = vmatpush.msra.mxu0 %v1135
  %v1137 = vand.u32 %v34, 4294901760
  %1138 = vmatpush.msra.mxu0 %v1137
  %v1139 = vand.u32 %v33, 4294901760
  %1140 = vmatpush.msra.mxu0 %v1139
  %v1141 = vand.u32 %v32, 4294901760
  %1142 = vmatpush.msra.mxu0 %v1141
  %v1143 = vand.u32 %v31, 4294901760
  %1144 = vmatpush.msra.mxu0 %v1143
  %v1145 = vand.u32 %v30, 4294901760
  %1146 = vmatpush.msra.mxu0 %v1145
  %v1147 = vand.u32 %v29, 4294901760
  %1148 = vmatpush.msra.mxu0 %v1147
  %v1149 = vand.u32 %v28, 4294901760
  %1150 = vmatpush.msra.mxu0 %v1149
  %v1151 = vand.u32 %v27, 4294901760
  %1152 = vmatpush.msra.mxu0 %v1151
  %v1153 = vand.u32 %v26, 4294901760
  %1154 = vmatpush.msra.mxu0 %v1153
  %v1155 = vand.u32 %v25, 4294901760
  %1156 = vmatpush.msra.mxu0 %v1155
  %v1157 = vand.u32 %v24, 4294901760
  %1158 = vmatpush.msra.mxu0 %v1157
  %v1159 = vand.u32 %v23, 4294901760
  %1160 = vmatpush.msra.mxu0 %v1159
  %v1161 = vand.u32 %v792, 4294901760
  %1162 = vmatmul.f32.gmra.mxu0 %v1161
  %v1163 = vpop.f32.mrf.mxu0
  %v1164 = vadd.f32 %v1123, %v1163
  %v1165 = vand.u32 %v796, 4294901760
  %1166 = vmatmul.f32.gmra.mxu0 %v1165
  %v1167 = vpop.f32.mrf.mxu0
  %v1168 = vadd.f32 %v1127, %v1167
  %1169 = vdwg.mxu0
  %v1170 = vmul.f32 %v17, %v17
  %v1171 = vmul.f32 %v18, %v18
  %1172 = vmatpush.msra.mxu0 0.0
  %1173 = vmatpush.msra.mxu0 0.0
  %1174 = vmatpush.msra.mxu0 0.0
  %1175 = vmatpush.msra.mxu0 0.0
  %1176 = vmatpush.msra.mxu0 0.0
  %1177 = vmatpush.msra.mxu0 0.0
  %1178 = vmatpush.msra.mxu0 0.0
  %1179 = vmatpush.msra.mxu0 0.0
  %1180 = vmatpush.msra.mxu0 0.0
  %1181 = vmatpush.msra.mxu0 0.0
  %1182 = vmatpush.msra.mxu0 0.0
  %1183 = vmatpush.msra.mxu0 0.0
  %1184 = vmatpush.msra.mxu0 0.0
  %1185 = vmatpush.msra.mxu0 0.0
  %v1186 = vand.u32 %v1171, 4294901760
  %1187 = vmatpush.msra.mxu0 %v1186
  %v1188 = vand.u32 %v1170, 4294901760
  %1189 = vmatpush.msra.mxu0 %v1188
  %v1190 = vand.u32 %v41, 4294901760
  %v1191 = vsub.f32 %v41, %v1190
  %v1192 = vand.u32 %v1191, 4294901760
  %v1193 = vsub.f32 %v1191, %v1192
  %v1194 = vand.u32 %v1193, 4294901760
  %1195 = vmatmul.f32.gmra.mxu0 %v1194
  %v1196 = vpop.f32.mrf.mxu0
  %v1197 = vadd.f32 0.0, %v1196
  %v1198 = vand.u32 %v44, 4294901760
  %v1199 = vsub.f32 %v44, %v1198
  %v1200 = vand.u32 %v1199, 4294901760
  %v1201 = vsub.f32 %v1199, %v1200
  %v1202 = vand.u32 %v1201, 4294901760
  %1203 = vmatmul.f32.gmra.mxu0 %v1202
  %v1204 = vpop.f32.mrf.mxu0
  %v1205 = vadd.f32 0.0, %v1204
  %1206 = vdwg.mxu0
  %1207 = vmatpush.msra.mxu0 0.0
  %1208 = vmatpush.msra.mxu0 0.0
  %1209 = vmatpush.msra.mxu0 0.0
  %1210 = vmatpush.msra.mxu0 0.0
  %1211 = vmatpush.msra.mxu0 0.0
  %1212 = vmatpush.msra.mxu0 0.0
  %1213 = vmatpush.msra.mxu0 0.0
  %1214 = vmatpush.msra.mxu0 0.0
  %1215 = vmatpush.msra.mxu0 0.0
  %1216 = vmatpush.msra.mxu0 0.0
  %1217 = vmatpush.msra.mxu0 0.0
  %1218 = vmatpush.msra.mxu0 0.0
  %1219 = vmatpush.msra.mxu0 0.0
  %1220 = vmatpush.msra.mxu0 0.0
  %v1221 = vand.u32 %v1171, 4294901760
  %v1222 = vsub.f32 %v1171, %v1221
  %v1223 = vand.u32 %v1222, 4294901760
  %v1224 = vsub.f32 %v1222, %v1223
  %v1225 = vand.u32 %v1224, 4294901760
  %1226 = vmatpush.msra.mxu0 %v1225
  %v1227 = vand.u32 %v1170, 4294901760
  %v1228 = vsub.f32 %v1170, %v1227
  %v1229 = vand.u32 %v1228, 4294901760
  %v1230 = vsub.f32 %v1228, %v1229
  %v1231 = vand.u32 %v1230, 4294901760
  %1232 = vmatpush.msra.mxu0 %v1231
  %v1233 = vand.u32 %v41, 4294901760
  %1234 = vmatmul.f32.gmra.mxu0 %v1233
  %v1235 = vpop.f32.mrf.mxu0
  %v1236 = vadd.f32 %v1197, %v1235
  %v1237 = vand.u32 %v44, 4294901760
  %1238 = vmatmul.f32.gmra.mxu0 %v1237
  %v1239 = vpop.f32.mrf.mxu0
  %v1240 = vadd.f32 %v1205, %v1239
  %1241 = vdwg.mxu0
  %1242 = vmatpush.msra.mxu0 0.0
  %1243 = vmatpush.msra.mxu0 0.0
  %1244 = vmatpush.msra.mxu0 0.0
  %1245 = vmatpush.msra.mxu0 0.0
  %1246 = vmatpush.msra.mxu0 0.0
  %1247 = vmatpush.msra.mxu0 0.0
  %1248 = vmatpush.msra.mxu0 0.0
  %1249 = vmatpush.msra.mxu0 0.0
  %1250 = vmatpush.msra.mxu0 0.0
  %1251 = vmatpush.msra.mxu0 0.0
  %1252 = vmatpush.msra.mxu0 0.0
  %1253 = vmatpush.msra.mxu0 0.0
  %1254 = vmatpush.msra.mxu0 0.0
  %1255 = vmatpush.msra.mxu0 0.0
  %v1256 = vand.u32 %v1171, 4294901760
  %v1257 = vsub.f32 %v1171, %v1256
  %1258 = vmatpush.msra.mxu0 %v1257
  %v1259 = vand.u32 %v1170, 4294901760
  %v1260 = vsub.f32 %v1170, %v1259
  %1261 = vmatpush.msra.mxu0 %v1260
  %v1262 = vand.u32 %v41, 4294901760
  %v1263 = vsub.f32 %v41, %v1262
  %1264 = vmatmul.f32.gmra.mxu0 %v1263
  %v1265 = vpop.f32.mrf.mxu0
  %v1266 = vadd.f32 %v1236, %v1265
  %v1267 = vand.u32 %v44, 4294901760
  %v1268 = vsub.f32 %v44, %v1267
  %1269 = vmatmul.f32.gmra.mxu0 %v1268
  %v1270 = vpop.f32.mrf.mxu0
  %v1271 = vadd.f32 %v1240, %v1270
  %1272 = vdwg.mxu0
  %1273 = vmatpush.msra.mxu0 0.0
  %1274 = vmatpush.msra.mxu0 0.0
  %1275 = vmatpush.msra.mxu0 0.0
  %1276 = vmatpush.msra.mxu0 0.0
  %1277 = vmatpush.msra.mxu0 0.0
  %1278 = vmatpush.msra.mxu0 0.0
  %1279 = vmatpush.msra.mxu0 0.0
  %1280 = vmatpush.msra.mxu0 0.0
  %1281 = vmatpush.msra.mxu0 0.0
  %1282 = vmatpush.msra.mxu0 0.0
  %1283 = vmatpush.msra.mxu0 0.0
  %1284 = vmatpush.msra.mxu0 0.0
  %1285 = vmatpush.msra.mxu0 0.0
  %1286 = vmatpush.msra.mxu0 0.0
  %v1287 = vand.u32 %v1171, 4294901760
  %1288 = vmatpush.msra.mxu0 %v1287
  %v1289 = vand.u32 %v1170, 4294901760
  %1290 = vmatpush.msra.mxu0 %v1289
  %v1291 = vand.u32 %v41, 4294901760
  %v1292 = vsub.f32 %v41, %v1291
  %v1293 = vand.u32 %v1292, 4294901760
  %1294 = vmatmul.f32.gmra.mxu0 %v1293
  %v1295 = vpop.f32.mrf.mxu0
  %v1296 = vadd.f32 %v1266, %v1295
  %v1297 = vand.u32 %v44, 4294901760
  %v1298 = vsub.f32 %v44, %v1297
  %v1299 = vand.u32 %v1298, 4294901760
  %1300 = vmatmul.f32.gmra.mxu0 %v1299
  %v1301 = vpop.f32.mrf.mxu0
  %v1302 = vadd.f32 %v1271, %v1301
  %1303 = vdwg.mxu0
  %1304 = vmatpush.msra.mxu0 0.0
  %1305 = vmatpush.msra.mxu0 0.0
  %1306 = vmatpush.msra.mxu0 0.0
  %1307 = vmatpush.msra.mxu0 0.0
  %1308 = vmatpush.msra.mxu0 0.0
  %1309 = vmatpush.msra.mxu0 0.0
  %1310 = vmatpush.msra.mxu0 0.0
  %1311 = vmatpush.msra.mxu0 0.0
  %1312 = vmatpush.msra.mxu0 0.0
  %1313 = vmatpush.msra.mxu0 0.0
  %1314 = vmatpush.msra.mxu0 0.0
  %1315 = vmatpush.msra.mxu0 0.0
  %1316 = vmatpush.msra.mxu0 0.0
  %1317 = vmatpush.msra.mxu0 0.0
  %v1318 = vand.u32 %v1171, 4294901760
  %v1319 = vsub.f32 %v1171, %v1318
  %v1320 = vand.u32 %v1319, 4294901760
  %1321 = vmatpush.msra.mxu0 %v1320
  %v1322 = vand.u32 %v1170, 4294901760
  %v1323 = vsub.f32 %v1170, %v1322
  %v1324 = vand.u32 %v1323, 4294901760
  %1325 = vmatpush.msra.mxu0 %v1324
  %v1326 = vand.u32 %v41, 4294901760
  %1327 = vmatmul.f32.gmra.mxu0 %v1326
  %v1328 = vpop.f32.mrf.mxu0
  %v1329 = vadd.f32 %v1296, %v1328
  %v1330 = vand.u32 %v44, 4294901760
  %1331 = vmatmul.f32.gmra.mxu0 %v1330
  %v1332 = vpop.f32.mrf.mxu0
  %v1333 = vadd.f32 %v1302, %v1332
  %1334 = vdwg.mxu0
  %1335 = vmatpush.msra.mxu0 0.0
  %1336 = vmatpush.msra.mxu0 0.0
  %1337 = vmatpush.msra.mxu0 0.0
  %1338 = vmatpush.msra.mxu0 0.0
  %1339 = vmatpush.msra.mxu0 0.0
  %1340 = vmatpush.msra.mxu0 0.0
  %1341 = vmatpush.msra.mxu0 0.0
  %1342 = vmatpush.msra.mxu0 0.0
  %1343 = vmatpush.msra.mxu0 0.0
  %1344 = vmatpush.msra.mxu0 0.0
  %1345 = vmatpush.msra.mxu0 0.0
  %1346 = vmatpush.msra.mxu0 0.0
  %1347 = vmatpush.msra.mxu0 0.0
  %1348 = vmatpush.msra.mxu0 0.0
  %v1349 = vand.u32 %v1171, 4294901760
  %1350 = vmatpush.msra.mxu0 %v1349
  %v1351 = vand.u32 %v1170, 4294901760
  %1352 = vmatpush.msra.mxu0 %v1351
  %v1353 = vand.u32 %v41, 4294901760
  %1354 = vmatmul.f32.gmra.mxu0 %v1353
  %v1355 = vpop.f32.mrf.mxu0
  %v1356 = vadd.f32 %v1329, %v1355
  %v1357 = vand.u32 %v44, 4294901760
  %1358 = vmatmul.f32.gmra.mxu0 %v1357
  %v1359 = vpop.f32.mrf.mxu0
  %v1360 = vadd.f32 %v1333, %v1359
  %1361 = vdwg.mxu0
  %v1362 = vand.u32 %v38, 4294901760
  %1363 = vmatpush.msra.mxu0 %v1362
  %v1364 = vand.u32 %v37, 4294901760
  %1365 = vmatpush.msra.mxu0 %v1364
  %v1366 = vand.u32 %v36, 4294901760
  %1367 = vmatpush.msra.mxu0 %v1366
  %v1368 = vand.u32 %v35, 4294901760
  %1369 = vmatpush.msra.mxu0 %v1368
  %v1370 = vand.u32 %v34, 4294901760
  %1371 = vmatpush.msra.mxu0 %v1370
  %v1372 = vand.u32 %v33, 4294901760
  %1373 = vmatpush.msra.mxu0 %v1372
  %v1374 = vand.u32 %v32, 4294901760
  %1375 = vmatpush.msra.mxu0 %v1374
  %v1376 = vand.u32 %v31, 4294901760
  %1377 = vmatpush.msra.mxu0 %v1376
  %v1378 = vand.u32 %v30, 4294901760
  %1379 = vmatpush.msra.mxu0 %v1378
  %v1380 = vand.u32 %v29, 4294901760
  %1381 = vmatpush.msra.mxu0 %v1380
  %v1382 = vand.u32 %v28, 4294901760
  %1383 = vmatpush.msra.mxu0 %v1382
  %v1384 = vand.u32 %v27, 4294901760
  %1385 = vmatpush.msra.mxu0 %v1384
  %v1386 = vand.u32 %v26, 4294901760
  %1387 = vmatpush.msra.mxu0 %v1386
  %v1388 = vand.u32 %v25, 4294901760
  %1389 = vmatpush.msra.mxu0 %v1388
  %v1390 = vand.u32 %v24, 4294901760
  %1391 = vmatpush.msra.mxu0 %v1390
  %v1392 = vand.u32 %v23, 4294901760
  %1393 = vmatpush.msra.mxu0 %v1392
  %v1394 = vand.u32 %v1356, 4294901760
  %v1395 = vsub.f32 %v1356, %v1394
  %v1396 = vand.u32 %v1395, 4294901760
  %v1397 = vsub.f32 %v1395, %v1396
  %v1398 = vand.u32 %v1397, 4294901760
  %1399 = vmatmul.f32.gmra.mxu0 %v1398
  %v1400 = vpop.f32.mrf.mxu0
  %v1401 = vadd.f32 0.0, %v1400
  %v1402 = vand.u32 %v1360, 4294901760
  %v1403 = vsub.f32 %v1360, %v1402
  %v1404 = vand.u32 %v1403, 4294901760
  %v1405 = vsub.f32 %v1403, %v1404
  %v1406 = vand.u32 %v1405, 4294901760
  %1407 = vmatmul.f32.gmra.mxu0 %v1406
  %v1408 = vpop.f32.mrf.mxu0
  %v1409 = vadd.f32 0.0, %v1408
  %1410 = vdwg.mxu0
  %v1411 = vand.u32 %v38, 4294901760
  %v1412 = vsub.f32 %v38, %v1411
  %v1413 = vand.u32 %v1412, 4294901760
  %v1414 = vsub.f32 %v1412, %v1413
  %v1415 = vand.u32 %v1414, 4294901760
  %1416 = vmatpush.msra.mxu0 %v1415
  %v1417 = vand.u32 %v37, 4294901760
  %v1418 = vsub.f32 %v37, %v1417
  %v1419 = vand.u32 %v1418, 4294901760
  %v1420 = vsub.f32 %v1418, %v1419
  %v1421 = vand.u32 %v1420, 4294901760
  %1422 = vmatpush.msra.mxu0 %v1421
  %v1423 = vand.u32 %v36, 4294901760
  %v1424 = vsub.f32 %v36, %v1423
  %v1425 = vand.u32 %v1424, 4294901760
  %v1426 = vsub.f32 %v1424, %v1425
  %v1427 = vand.u32 %v1426, 4294901760
  %1428 = vmatpush.msra.mxu0 %v1427
  %v1429 = vand.u32 %v35, 4294901760
  %v1430 = vsub.f32 %v35, %v1429
  %v1431 = vand.u32 %v1430, 4294901760
  %v1432 = vsub.f32 %v1430, %v1431
  %v1433 = vand.u32 %v1432, 4294901760
  %1434 = vmatpush.msra.mxu0 %v1433
  %v1435 = vand.u32 %v34, 4294901760
  %v1436 = vsub.f32 %v34, %v1435
  %v1437 = vand.u32 %v1436, 4294901760
  %v1438 = vsub.f32 %v1436, %v1437
  %v1439 = vand.u32 %v1438, 4294901760
  %1440 = vmatpush.msra.mxu0 %v1439
  %v1441 = vand.u32 %v33, 4294901760
  %v1442 = vsub.f32 %v33, %v1441
  %v1443 = vand.u32 %v1442, 4294901760
  %v1444 = vsub.f32 %v1442, %v1443
  %v1445 = vand.u32 %v1444, 4294901760
  %1446 = vmatpush.msra.mxu0 %v1445
  %v1447 = vand.u32 %v32, 4294901760
  %v1448 = vsub.f32 %v32, %v1447
  %v1449 = vand.u32 %v1448, 4294901760
  %v1450 = vsub.f32 %v1448, %v1449
  %v1451 = vand.u32 %v1450, 4294901760
  %1452 = vmatpush.msra.mxu0 %v1451
  %v1453 = vand.u32 %v31, 4294901760
  %v1454 = vsub.f32 %v31, %v1453
  %v1455 = vand.u32 %v1454, 4294901760
  %v1456 = vsub.f32 %v1454, %v1455
  %v1457 = vand.u32 %v1456, 4294901760
  %1458 = vmatpush.msra.mxu0 %v1457
  %v1459 = vand.u32 %v30, 4294901760
  %v1460 = vsub.f32 %v30, %v1459
  %v1461 = vand.u32 %v1460, 4294901760
  %v1462 = vsub.f32 %v1460, %v1461
  %v1463 = vand.u32 %v1462, 4294901760
  %1464 = vmatpush.msra.mxu0 %v1463
  %v1465 = vand.u32 %v29, 4294901760
  %v1466 = vsub.f32 %v29, %v1465
  %v1467 = vand.u32 %v1466, 4294901760
  %v1468 = vsub.f32 %v1466, %v1467
  %v1469 = vand.u32 %v1468, 4294901760
  %1470 = vmatpush.msra.mxu0 %v1469
  %v1471 = vand.u32 %v28, 4294901760
  %v1472 = vsub.f32 %v28, %v1471
  %v1473 = vand.u32 %v1472, 4294901760
  %v1474 = vsub.f32 %v1472, %v1473
  %v1475 = vand.u32 %v1474, 4294901760
  %1476 = vmatpush.msra.mxu0 %v1475
  %v1477 = vand.u32 %v27, 4294901760
  %v1478 = vsub.f32 %v27, %v1477
  %v1479 = vand.u32 %v1478, 4294901760
  %v1480 = vsub.f32 %v1478, %v1479
  %v1481 = vand.u32 %v1480, 4294901760
  %1482 = vmatpush.msra.mxu0 %v1481
  %v1483 = vand.u32 %v26, 4294901760
  %v1484 = vsub.f32 %v26, %v1483
  %v1485 = vand.u32 %v1484, 4294901760
  %v1486 = vsub.f32 %v1484, %v1485
  %v1487 = vand.u32 %v1486, 4294901760
  %1488 = vmatpush.msra.mxu0 %v1487
  %v1489 = vand.u32 %v25, 4294901760
  %v1490 = vsub.f32 %v25, %v1489
  %v1491 = vand.u32 %v1490, 4294901760
  %v1492 = vsub.f32 %v1490, %v1491
  %v1493 = vand.u32 %v1492, 4294901760
  %1494 = vmatpush.msra.mxu0 %v1493
  %v1495 = vand.u32 %v24, 4294901760
  %v1496 = vsub.f32 %v24, %v1495
  %v1497 = vand.u32 %v1496, 4294901760
  %v1498 = vsub.f32 %v1496, %v1497
  %v1499 = vand.u32 %v1498, 4294901760
  %1500 = vmatpush.msra.mxu0 %v1499
  %v1501 = vand.u32 %v23, 4294901760
  %v1502 = vsub.f32 %v23, %v1501
  %v1503 = vand.u32 %v1502, 4294901760
  %v1504 = vsub.f32 %v1502, %v1503
  %v1505 = vand.u32 %v1504, 4294901760
  %1506 = vmatpush.msra.mxu0 %v1505
  %v1507 = vand.u32 %v1356, 4294901760
  %1508 = vmatmul.f32.gmra.mxu0 %v1507
  %v1509 = vpop.f32.mrf.mxu0
  %v1510 = vadd.f32 %v1401, %v1509
  %v1511 = vand.u32 %v1360, 4294901760
  %1512 = vmatmul.f32.gmra.mxu0 %v1511
  %v1513 = vpop.f32.mrf.mxu0
  %v1514 = vadd.f32 %v1409, %v1513
  %1515 = vdwg.mxu0
  %v1516 = vand.u32 %v38, 4294901760
  %v1517 = vsub.f32 %v38, %v1516
  %1518 = vmatpush.msra.mxu0 %v1517
  %v1519 = vand.u32 %v37, 4294901760
  %v1520 = vsub.f32 %v37, %v1519
  %1521 = vmatpush.msra.mxu0 %v1520
  %v1522 = vand.u32 %v36, 4294901760
  %v1523 = vsub.f32 %v36, %v1522
  %1524 = vmatpush.msra.mxu0 %v1523
  %v1525 = vand.u32 %v35, 4294901760
  %v1526 = vsub.f32 %v35, %v1525
  %1527 = vmatpush.msra.mxu0 %v1526
  %v1528 = vand.u32 %v34, 4294901760
  %v1529 = vsub.f32 %v34, %v1528
  %1530 = vmatpush.msra.mxu0 %v1529
  %v1531 = vand.u32 %v33, 4294901760
  %v1532 = vsub.f32 %v33, %v1531
  %1533 = vmatpush.msra.mxu0 %v1532
  %v1534 = vand.u32 %v32, 4294901760
  %v1535 = vsub.f32 %v32, %v1534
  %1536 = vmatpush.msra.mxu0 %v1535
  %v1537 = vand.u32 %v31, 4294901760
  %v1538 = vsub.f32 %v31, %v1537
  %1539 = vmatpush.msra.mxu0 %v1538
  %v1540 = vand.u32 %v30, 4294901760
  %v1541 = vsub.f32 %v30, %v1540
  %1542 = vmatpush.msra.mxu0 %v1541
  %v1543 = vand.u32 %v29, 4294901760
  %v1544 = vsub.f32 %v29, %v1543
  %1545 = vmatpush.msra.mxu0 %v1544
  %v1546 = vand.u32 %v28, 4294901760
  %v1547 = vsub.f32 %v28, %v1546
  %1548 = vmatpush.msra.mxu0 %v1547
  %v1549 = vand.u32 %v27, 4294901760
  %v1550 = vsub.f32 %v27, %v1549
  %1551 = vmatpush.msra.mxu0 %v1550
  %v1552 = vand.u32 %v26, 4294901760
  %v1553 = vsub.f32 %v26, %v1552
  %1554 = vmatpush.msra.mxu0 %v1553
  %v1555 = vand.u32 %v25, 4294901760
  %v1556 = vsub.f32 %v25, %v1555
  %1557 = vmatpush.msra.mxu0 %v1556
  %v1558 = vand.u32 %v24, 4294901760
  %v1559 = vsub.f32 %v24, %v1558
  %1560 = vmatpush.msra.mxu0 %v1559
  %v1561 = vand.u32 %v23, 4294901760
  %v1562 = vsub.f32 %v23, %v1561
  %1563 = vmatpush.msra.mxu0 %v1562
  %v1564 = vand.u32 %v1356, 4294901760
  %v1565 = vsub.f32 %v1356, %v1564
  %1566 = vmatmul.f32.gmra.mxu0 %v1565
  %v1567 = vpop.f32.mrf.mxu0
  %v1568 = vadd.f32 %v1510, %v1567
  %v1569 = vand.u32 %v1360, 4294901760
  %v1570 = vsub.f32 %v1360, %v1569
  %1571 = vmatmul.f32.gmra.mxu0 %v1570
  %v1572 = vpop.f32.mrf.mxu0
  %v1573 = vadd.f32 %v1514, %v1572
  %1574 = vdwg.mxu0
  %v1575 = vand.u32 %v38, 4294901760
  %1576 = vmatpush.msra.mxu0 %v1575
  %v1577 = vand.u32 %v37, 4294901760
  %1578 = vmatpush.msra.mxu0 %v1577
  %v1579 = vand.u32 %v36, 4294901760
  %1580 = vmatpush.msra.mxu0 %v1579
  %v1581 = vand.u32 %v35, 4294901760
  %1582 = vmatpush.msra.mxu0 %v1581
  %v1583 = vand.u32 %v34, 4294901760
  %1584 = vmatpush.msra.mxu0 %v1583
  %v1585 = vand.u32 %v33, 4294901760
  %1586 = vmatpush.msra.mxu0 %v1585
  %v1587 = vand.u32 %v32, 4294901760
  %1588 = vmatpush.msra.mxu0 %v1587
  %v1589 = vand.u32 %v31, 4294901760
  %1590 = vmatpush.msra.mxu0 %v1589
  %v1591 = vand.u32 %v30, 4294901760
  %1592 = vmatpush.msra.mxu0 %v1591
  %v1593 = vand.u32 %v29, 4294901760
  %1594 = vmatpush.msra.mxu0 %v1593
  %v1595 = vand.u32 %v28, 4294901760
  %1596 = vmatpush.msra.mxu0 %v1595
  %v1597 = vand.u32 %v27, 4294901760
  %1598 = vmatpush.msra.mxu0 %v1597
  %v1599 = vand.u32 %v26, 4294901760
  %1600 = vmatpush.msra.mxu0 %v1599
  %v1601 = vand.u32 %v25, 4294901760
  %1602 = vmatpush.msra.mxu0 %v1601
  %v1603 = vand.u32 %v24, 4294901760
  %1604 = vmatpush.msra.mxu0 %v1603
  %v1605 = vand.u32 %v23, 4294901760
  %1606 = vmatpush.msra.mxu0 %v1605
  %v1607 = vand.u32 %v1356, 4294901760
  %v1608 = vsub.f32 %v1356, %v1607
  %v1609 = vand.u32 %v1608, 4294901760
  %1610 = vmatmul.f32.gmra.mxu0 %v1609
  %v1611 = vpop.f32.mrf.mxu0
  %v1612 = vadd.f32 %v1568, %v1611
  %v1613 = vand.u32 %v1360, 4294901760
  %v1614 = vsub.f32 %v1360, %v1613
  %v1615 = vand.u32 %v1614, 4294901760
  %1616 = vmatmul.f32.gmra.mxu0 %v1615
  %v1617 = vpop.f32.mrf.mxu0
  %v1618 = vadd.f32 %v1573, %v1617
  %1619 = vdwg.mxu0
  %v1620 = vand.u32 %v38, 4294901760
  %v1621 = vsub.f32 %v38, %v1620
  %v1622 = vand.u32 %v1621, 4294901760
  %1623 = vmatpush.msra.mxu0 %v1622
  %v1624 = vand.u32 %v37, 4294901760
  %v1625 = vsub.f32 %v37, %v1624
  %v1626 = vand.u32 %v1625, 4294901760
  %1627 = vmatpush.msra.mxu0 %v1626
  %v1628 = vand.u32 %v36, 4294901760
  %v1629 = vsub.f32 %v36, %v1628
  %v1630 = vand.u32 %v1629, 4294901760
  %1631 = vmatpush.msra.mxu0 %v1630
  %v1632 = vand.u32 %v35, 4294901760
  %v1633 = vsub.f32 %v35, %v1632
  %v1634 = vand.u32 %v1633, 4294901760
  %1635 = vmatpush.msra.mxu0 %v1634
  %v1636 = vand.u32 %v34, 4294901760
  %v1637 = vsub.f32 %v34, %v1636
  %v1638 = vand.u32 %v1637, 4294901760
  %1639 = vmatpush.msra.mxu0 %v1638
  %v1640 = vand.u32 %v33, 4294901760
  %v1641 = vsub.f32 %v33, %v1640
  %v1642 = vand.u32 %v1641, 4294901760
  %1643 = vmatpush.msra.mxu0 %v1642
  %v1644 = vand.u32 %v32, 4294901760
  %v1645 = vsub.f32 %v32, %v1644
  %v1646 = vand.u32 %v1645, 4294901760
  %1647 = vmatpush.msra.mxu0 %v1646
  %v1648 = vand.u32 %v31, 4294901760
  %v1649 = vsub.f32 %v31, %v1648
  %v1650 = vand.u32 %v1649, 4294901760
  %1651 = vmatpush.msra.mxu0 %v1650
  %v1652 = vand.u32 %v30, 4294901760
  %v1653 = vsub.f32 %v30, %v1652
  %v1654 = vand.u32 %v1653, 4294901760
  %1655 = vmatpush.msra.mxu0 %v1654
  %v1656 = vand.u32 %v29, 4294901760
  %v1657 = vsub.f32 %v29, %v1656
  %v1658 = vand.u32 %v1657, 4294901760
  %1659 = vmatpush.msra.mxu0 %v1658
  %v1660 = vand.u32 %v28, 4294901760
  %v1661 = vsub.f32 %v28, %v1660
  %v1662 = vand.u32 %v1661, 4294901760
  %1663 = vmatpush.msra.mxu0 %v1662
  %v1664 = vand.u32 %v27, 4294901760
  %v1665 = vsub.f32 %v27, %v1664
  %v1666 = vand.u32 %v1665, 4294901760
  %1667 = vmatpush.msra.mxu0 %v1666
  %v1668 = vand.u32 %v26, 4294901760
  %v1669 = vsub.f32 %v26, %v1668
  %v1670 = vand.u32 %v1669, 4294901760
  %1671 = vmatpush.msra.mxu0 %v1670
  %v1672 = vand.u32 %v25, 4294901760
  %v1673 = vsub.f32 %v25, %v1672
  %v1674 = vand.u32 %v1673, 4294901760
  %1675 = vmatpush.msra.mxu0 %v1674
  %v1676 = vand.u32 %v24, 4294901760
  %v1677 = vsub.f32 %v24, %v1676
  %v1678 = vand.u32 %v1677, 4294901760
  %1679 = vmatpush.msra.mxu0 %v1678
  %v1680 = vand.u32 %v23, 4294901760
  %v1681 = vsub.f32 %v23, %v1680
  %v1682 = vand.u32 %v1681, 4294901760
  %1683 = vmatpush.msra.mxu0 %v1682
  %v1684 = vand.u32 %v1356, 4294901760
  %1685 = vmatmul.f32.gmra.mxu0 %v1684
  %v1686 = vpop.f32.mrf.mxu0
  %v1687 = vadd.f32 %v1612, %v1686
  %v1688 = vand.u32 %v1360, 4294901760
  %1689 = vmatmul.f32.gmra.mxu0 %v1688
  %v1690 = vpop.f32.mrf.mxu0
  %v1691 = vadd.f32 %v1618, %v1690
  %1692 = vdwg.mxu0
  %v1693 = vand.u32 %v38, 4294901760
  %1694 = vmatpush.msra.mxu0 %v1693
  %v1695 = vand.u32 %v37, 4294901760
  %1696 = vmatpush.msra.mxu0 %v1695
  %v1697 = vand.u32 %v36, 4294901760
  %1698 = vmatpush.msra.mxu0 %v1697
  %v1699 = vand.u32 %v35, 4294901760
  %1700 = vmatpush.msra.mxu0 %v1699
  %v1701 = vand.u32 %v34, 4294901760
  %1702 = vmatpush.msra.mxu0 %v1701
  %v1703 = vand.u32 %v33, 4294901760
  %1704 = vmatpush.msra.mxu0 %v1703
  %v1705 = vand.u32 %v32, 4294901760
  %1706 = vmatpush.msra.mxu0 %v1705
  %v1707 = vand.u32 %v31, 4294901760
  %1708 = vmatpush.msra.mxu0 %v1707
  %v1709 = vand.u32 %v30, 4294901760
  %1710 = vmatpush.msra.mxu0 %v1709
  %v1711 = vand.u32 %v29, 4294901760
  %1712 = vmatpush.msra.mxu0 %v1711
  %v1713 = vand.u32 %v28, 4294901760
  %1714 = vmatpush.msra.mxu0 %v1713
  %v1715 = vand.u32 %v27, 4294901760
  %1716 = vmatpush.msra.mxu0 %v1715
  %v1717 = vand.u32 %v26, 4294901760
  %1718 = vmatpush.msra.mxu0 %v1717
  %v1719 = vand.u32 %v25, 4294901760
  %1720 = vmatpush.msra.mxu0 %v1719
  %v1721 = vand.u32 %v24, 4294901760
  %1722 = vmatpush.msra.mxu0 %v1721
  %v1723 = vand.u32 %v23, 4294901760
  %1724 = vmatpush.msra.mxu0 %v1723
  %v1725 = vand.u32 %v1356, 4294901760
  %1726 = vmatmul.f32.gmra.mxu0 %v1725
  %v1727 = vpop.f32.mrf.mxu0
  %v1728 = vadd.f32 %v1687, %v1727
  %v1729 = vand.u32 %v1360, 4294901760
  %1730 = vmatmul.f32.gmra.mxu0 %v1729
  %v1731 = vpop.f32.mrf.mxu0
  %v1732 = vadd.f32 %v1691, %v1731
  %1733 = vdwg.mxu0
  %v1734 = vmul.f32 %v19, %v19
  %v1735 = vmul.f32 %v20, %v20
  %1736 = vmatpush.msra.mxu0 0.0
  %1737 = vmatpush.msra.mxu0 0.0
  %1738 = vmatpush.msra.mxu0 0.0
  %1739 = vmatpush.msra.mxu0 0.0
  %1740 = vmatpush.msra.mxu0 0.0
  %1741 = vmatpush.msra.mxu0 0.0
  %1742 = vmatpush.msra.mxu0 0.0
  %1743 = vmatpush.msra.mxu0 0.0
  %1744 = vmatpush.msra.mxu0 0.0
  %1745 = vmatpush.msra.mxu0 0.0
  %1746 = vmatpush.msra.mxu0 0.0
  %1747 = vmatpush.msra.mxu0 0.0
  %1748 = vmatpush.msra.mxu0 0.0
  %1749 = vmatpush.msra.mxu0 0.0
  %v1750 = vand.u32 %v1735, 4294901760
  %1751 = vmatpush.msra.mxu0 %v1750
  %v1752 = vand.u32 %v1734, 4294901760
  %1753 = vmatpush.msra.mxu0 %v1752
  %v1754 = vand.u32 %v41, 4294901760
  %v1755 = vsub.f32 %v41, %v1754
  %v1756 = vand.u32 %v1755, 4294901760
  %v1757 = vsub.f32 %v1755, %v1756
  %v1758 = vand.u32 %v1757, 4294901760
  %1759 = vmatmul.f32.gmra.mxu0 %v1758
  %v1760 = vpop.f32.mrf.mxu0
  %v1761 = vadd.f32 0.0, %v1760
  %v1762 = vand.u32 %v44, 4294901760
  %v1763 = vsub.f32 %v44, %v1762
  %v1764 = vand.u32 %v1763, 4294901760
  %v1765 = vsub.f32 %v1763, %v1764
  %v1766 = vand.u32 %v1765, 4294901760
  %1767 = vmatmul.f32.gmra.mxu0 %v1766
  %v1768 = vpop.f32.mrf.mxu0
  %v1769 = vadd.f32 0.0, %v1768
  %1770 = vdwg.mxu0
  %1771 = vmatpush.msra.mxu0 0.0
  %1772 = vmatpush.msra.mxu0 0.0
  %1773 = vmatpush.msra.mxu0 0.0
  %1774 = vmatpush.msra.mxu0 0.0
  %1775 = vmatpush.msra.mxu0 0.0
  %1776 = vmatpush.msra.mxu0 0.0
  %1777 = vmatpush.msra.mxu0 0.0
  %1778 = vmatpush.msra.mxu0 0.0
  %1779 = vmatpush.msra.mxu0 0.0
  %1780 = vmatpush.msra.mxu0 0.0
  %1781 = vmatpush.msra.mxu0 0.0
  %1782 = vmatpush.msra.mxu0 0.0
  %1783 = vmatpush.msra.mxu0 0.0
  %1784 = vmatpush.msra.mxu0 0.0
  %v1785 = vand.u32 %v1735, 4294901760
  %v1786 = vsub.f32 %v1735, %v1785
  %v1787 = vand.u32 %v1786, 4294901760
  %v1788 = vsub.f32 %v1786, %v1787
  %v1789 = vand.u32 %v1788, 4294901760
  %1790 = vmatpush.msra.mxu0 %v1789
  %v1791 = vand.u32 %v1734, 4294901760
  %v1792 = vsub.f32 %v1734, %v1791
  %v1793 = vand.u32 %v1792, 4294901760
  %v1794 = vsub.f32 %v1792, %v1793
  %v1795 = vand.u32 %v1794, 4294901760
  %1796 = vmatpush.msra.mxu0 %v1795
  %v1797 = vand.u32 %v41, 4294901760
  %1798 = vmatmul.f32.gmra.mxu0 %v1797
  %v1799 = vpop.f32.mrf.mxu0
  %v1800 = vadd.f32 %v1761, %v1799
  %v1801 = vand.u32 %v44, 4294901760
  %1802 = vmatmul.f32.gmra.mxu0 %v1801
  %v1803 = vpop.f32.mrf.mxu0
  %v1804 = vadd.f32 %v1769, %v1803
  %1805 = vdwg.mxu0
  %1806 = vmatpush.msra.mxu0 0.0
  %1807 = vmatpush.msra.mxu0 0.0
  %1808 = vmatpush.msra.mxu0 0.0
  %1809 = vmatpush.msra.mxu0 0.0
  %1810 = vmatpush.msra.mxu0 0.0
  %1811 = vmatpush.msra.mxu0 0.0
  %1812 = vmatpush.msra.mxu0 0.0
  %1813 = vmatpush.msra.mxu0 0.0
  %1814 = vmatpush.msra.mxu0 0.0
  %1815 = vmatpush.msra.mxu0 0.0
  %1816 = vmatpush.msra.mxu0 0.0
  %1817 = vmatpush.msra.mxu0 0.0
  %1818 = vmatpush.msra.mxu0 0.0
  %1819 = vmatpush.msra.mxu0 0.0
  %v1820 = vand.u32 %v1735, 4294901760
  %v1821 = vsub.f32 %v1735, %v1820
  %1822 = vmatpush.msra.mxu0 %v1821
  %v1823 = vand.u32 %v1734, 4294901760
  %v1824 = vsub.f32 %v1734, %v1823
  %1825 = vmatpush.msra.mxu0 %v1824
  %v1826 = vand.u32 %v41, 4294901760
  %v1827 = vsub.f32 %v41, %v1826
  %1828 = vmatmul.f32.gmra.mxu0 %v1827
  %v1829 = vpop.f32.mrf.mxu0
  %v1830 = vadd.f32 %v1800, %v1829
  %v1831 = vand.u32 %v44, 4294901760
  %v1832 = vsub.f32 %v44, %v1831
  %1833 = vmatmul.f32.gmra.mxu0 %v1832
  %v1834 = vpop.f32.mrf.mxu0
  %v1835 = vadd.f32 %v1804, %v1834
  %1836 = vdwg.mxu0
  %1837 = vmatpush.msra.mxu0 0.0
  %1838 = vmatpush.msra.mxu0 0.0
  %1839 = vmatpush.msra.mxu0 0.0
  %1840 = vmatpush.msra.mxu0 0.0
  %1841 = vmatpush.msra.mxu0 0.0
  %1842 = vmatpush.msra.mxu0 0.0
  %1843 = vmatpush.msra.mxu0 0.0
  %1844 = vmatpush.msra.mxu0 0.0
  %1845 = vmatpush.msra.mxu0 0.0
  %1846 = vmatpush.msra.mxu0 0.0
  %1847 = vmatpush.msra.mxu0 0.0
  %1848 = vmatpush.msra.mxu0 0.0
  %1849 = vmatpush.msra.mxu0 0.0
  %1850 = vmatpush.msra.mxu0 0.0
  %v1851 = vand.u32 %v1735, 4294901760
  %1852 = vmatpush.msra.mxu0 %v1851
  %v1853 = vand.u32 %v1734, 4294901760
  %1854 = vmatpush.msra.mxu0 %v1853
  %v1855 = vand.u32 %v41, 4294901760
  %v1856 = vsub.f32 %v41, %v1855
  %v1857 = vand.u32 %v1856, 4294901760
  %1858 = vmatmul.f32.gmra.mxu0 %v1857
  %v1859 = vpop.f32.mrf.mxu0
  %v1860 = vadd.f32 %v1830, %v1859
  %v1861 = vand.u32 %v44, 4294901760
  %v1862 = vsub.f32 %v44, %v1861
  %v1863 = vand.u32 %v1862, 4294901760
  %1864 = vmatmul.f32.gmra.mxu0 %v1863
  %v1865 = vpop.f32.mrf.mxu0
  %v1866 = vadd.f32 %v1835, %v1865
  %1867 = vdwg.mxu0
  %1868 = vmatpush.msra.mxu0 0.0
  %1869 = vmatpush.msra.mxu0 0.0
  %1870 = vmatpush.msra.mxu0 0.0
  %1871 = vmatpush.msra.mxu0 0.0
  %1872 = vmatpush.msra.mxu0 0.0
  %1873 = vmatpush.msra.mxu0 0.0
  %1874 = vmatpush.msra.mxu0 0.0
  %1875 = vmatpush.msra.mxu0 0.0
  %1876 = vmatpush.msra.mxu0 0.0
  %1877 = vmatpush.msra.mxu0 0.0
  %1878 = vmatpush.msra.mxu0 0.0
  %1879 = vmatpush.msra.mxu0 0.0
  %1880 = vmatpush.msra.mxu0 0.0
  %1881 = vmatpush.msra.mxu0 0.0
  %v1882 = vand.u32 %v1735, 4294901760
  %v1883 = vsub.f32 %v1735, %v1882
  %v1884 = vand.u32 %v1883, 4294901760
  %1885 = vmatpush.msra.mxu0 %v1884
  %v1886 = vand.u32 %v1734, 4294901760
  %v1887 = vsub.f32 %v1734, %v1886
  %v1888 = vand.u32 %v1887, 4294901760
  %1889 = vmatpush.msra.mxu0 %v1888
  %v1890 = vand.u32 %v41, 4294901760
  %1891 = vmatmul.f32.gmra.mxu0 %v1890
  %v1892 = vpop.f32.mrf.mxu0
  %v1893 = vadd.f32 %v1860, %v1892
  %v1894 = vand.u32 %v44, 4294901760
  %1895 = vmatmul.f32.gmra.mxu0 %v1894
  %v1896 = vpop.f32.mrf.mxu0
  %v1897 = vadd.f32 %v1866, %v1896
  %1898 = vdwg.mxu0
  %1899 = vmatpush.msra.mxu0 0.0
  %1900 = vmatpush.msra.mxu0 0.0
  %1901 = vmatpush.msra.mxu0 0.0
  %1902 = vmatpush.msra.mxu0 0.0
  %1903 = vmatpush.msra.mxu0 0.0
  %1904 = vmatpush.msra.mxu0 0.0
  %1905 = vmatpush.msra.mxu0 0.0
  %1906 = vmatpush.msra.mxu0 0.0
  %1907 = vmatpush.msra.mxu0 0.0
  %1908 = vmatpush.msra.mxu0 0.0
  %1909 = vmatpush.msra.mxu0 0.0
  %1910 = vmatpush.msra.mxu0 0.0
  %1911 = vmatpush.msra.mxu0 0.0
  %1912 = vmatpush.msra.mxu0 0.0
  %v1913 = vand.u32 %v1735, 4294901760
  %1914 = vmatpush.msra.mxu0 %v1913
  %v1915 = vand.u32 %v1734, 4294901760
  %1916 = vmatpush.msra.mxu0 %v1915
  %v1917 = vand.u32 %v41, 4294901760
  %1918 = vmatmul.f32.gmra.mxu0 %v1917
  %v1919 = vpop.f32.mrf.mxu0
  %v1920 = vadd.f32 %v1893, %v1919
  %v1921 = vand.u32 %v44, 4294901760
  %1922 = vmatmul.f32.gmra.mxu0 %v1921
  %v1923 = vpop.f32.mrf.mxu0
  %v1924 = vadd.f32 %v1897, %v1923
  %1925 = vdwg.mxu0
  %v1926 = vand.u32 %v38, 4294901760
  %1927 = vmatpush.msra.mxu0 %v1926
  %v1928 = vand.u32 %v37, 4294901760
  %1929 = vmatpush.msra.mxu0 %v1928
  %v1930 = vand.u32 %v36, 4294901760
  %1931 = vmatpush.msra.mxu0 %v1930
  %v1932 = vand.u32 %v35, 4294901760
  %1933 = vmatpush.msra.mxu0 %v1932
  %v1934 = vand.u32 %v34, 4294901760
  %1935 = vmatpush.msra.mxu0 %v1934
  %v1936 = vand.u32 %v33, 4294901760
  %1937 = vmatpush.msra.mxu0 %v1936
  %v1938 = vand.u32 %v32, 4294901760
  %1939 = vmatpush.msra.mxu0 %v1938
  %v1940 = vand.u32 %v31, 4294901760
  %1941 = vmatpush.msra.mxu0 %v1940
  %v1942 = vand.u32 %v30, 4294901760
  %1943 = vmatpush.msra.mxu0 %v1942
  %v1944 = vand.u32 %v29, 4294901760
  %1945 = vmatpush.msra.mxu0 %v1944
  %v1946 = vand.u32 %v28, 4294901760
  %1947 = vmatpush.msra.mxu0 %v1946
  %v1948 = vand.u32 %v27, 4294901760
  %1949 = vmatpush.msra.mxu0 %v1948
  %v1950 = vand.u32 %v26, 4294901760
  %1951 = vmatpush.msra.mxu0 %v1950
  %v1952 = vand.u32 %v25, 4294901760
  %1953 = vmatpush.msra.mxu0 %v1952
  %v1954 = vand.u32 %v24, 4294901760
  %1955 = vmatpush.msra.mxu0 %v1954
  %v1956 = vand.u32 %v23, 4294901760
  %1957 = vmatpush.msra.mxu0 %v1956
  %v1958 = vand.u32 %v1920, 4294901760
  %v1959 = vsub.f32 %v1920, %v1958
  %v1960 = vand.u32 %v1959, 4294901760
  %v1961 = vsub.f32 %v1959, %v1960
  %v1962 = vand.u32 %v1961, 4294901760
  %1963 = vmatmul.f32.gmra.mxu0 %v1962
  %v1964 = vpop.f32.mrf.mxu0
  %v1965 = vadd.f32 0.0, %v1964
  %v1966 = vand.u32 %v1924, 4294901760
  %v1967 = vsub.f32 %v1924, %v1966
  %v1968 = vand.u32 %v1967, 4294901760
  %v1969 = vsub.f32 %v1967, %v1968
  %v1970 = vand.u32 %v1969, 4294901760
  %1971 = vmatmul.f32.gmra.mxu0 %v1970
  %v1972 = vpop.f32.mrf.mxu0
  %v1973 = vadd.f32 0.0, %v1972
  %1974 = vdwg.mxu0
  %v1975 = vand.u32 %v38, 4294901760
  %v1976 = vsub.f32 %v38, %v1975
  %v1977 = vand.u32 %v1976, 4294901760
  %v1978 = vsub.f32 %v1976, %v1977
  %v1979 = vand.u32 %v1978, 4294901760
  %1980 = vmatpush.msra.mxu0 %v1979
  %v1981 = vand.u32 %v37, 4294901760
  %v1982 = vsub.f32 %v37, %v1981
  %v1983 = vand.u32 %v1982, 4294901760
  %v1984 = vsub.f32 %v1982, %v1983
  %v1985 = vand.u32 %v1984, 4294901760
  %1986 = vmatpush.msra.mxu0 %v1985
  %v1987 = vand.u32 %v36, 4294901760
  %v1988 = vsub.f32 %v36, %v1987
  %v1989 = vand.u32 %v1988, 4294901760
  %v1990 = vsub.f32 %v1988, %v1989
  %v1991 = vand.u32 %v1990, 4294901760
  %1992 = vmatpush.msra.mxu0 %v1991
  %v1993 = vand.u32 %v35, 4294901760
  %v1994 = vsub.f32 %v35, %v1993
  %v1995 = vand.u32 %v1994, 4294901760
  %v1996 = vsub.f32 %v1994, %v1995
  %v1997 = vand.u32 %v1996, 4294901760
  %1998 = vmatpush.msra.mxu0 %v1997
  %v1999 = vand.u32 %v34, 4294901760
  %v2000 = vsub.f32 %v34, %v1999
  %v2001 = vand.u32 %v2000, 4294901760
  %v2002 = vsub.f32 %v2000, %v2001
  %v2003 = vand.u32 %v2002, 4294901760
  %2004 = vmatpush.msra.mxu0 %v2003
  %v2005 = vand.u32 %v33, 4294901760
  %v2006 = vsub.f32 %v33, %v2005
  %v2007 = vand.u32 %v2006, 4294901760
  %v2008 = vsub.f32 %v2006, %v2007
  %v2009 = vand.u32 %v2008, 4294901760
  %2010 = vmatpush.msra.mxu0 %v2009
  %v2011 = vand.u32 %v32, 4294901760
  %v2012 = vsub.f32 %v32, %v2011
  %v2013 = vand.u32 %v2012, 4294901760
  %v2014 = vsub.f32 %v2012, %v2013
  %v2015 = vand.u32 %v2014, 4294901760
  %2016 = vmatpush.msra.mxu0 %v2015
  %v2017 = vand.u32 %v31, 4294901760
  %v2018 = vsub.f32 %v31, %v2017
  %v2019 = vand.u32 %v2018, 4294901760
  %v2020 = vsub.f32 %v2018, %v2019
  %v2021 = vand.u32 %v2020, 4294901760
  %2022 = vmatpush.msra.mxu0 %v2021
  %v2023 = vand.u32 %v30, 4294901760
  %v2024 = vsub.f32 %v30, %v2023
  %v2025 = vand.u32 %v2024, 4294901760
  %v2026 = vsub.f32 %v2024, %v2025
  %v2027 = vand.u32 %v2026, 4294901760
  %2028 = vmatpush.msra.mxu0 %v2027
  %v2029 = vand.u32 %v29, 4294901760
  %v2030 = vsub.f32 %v29, %v2029
  %v2031 = vand.u32 %v2030, 4294901760
  %v2032 = vsub.f32 %v2030, %v2031
  %v2033 = vand.u32 %v2032, 4294901760
  %2034 = vmatpush.msra.mxu0 %v2033
  %v2035 = vand.u32 %v28, 4294901760
  %v2036 = vsub.f32 %v28, %v2035
  %v2037 = vand.u32 %v2036, 4294901760
  %v2038 = vsub.f32 %v2036, %v2037
  %v2039 = vand.u32 %v2038, 4294901760
  %2040 = vmatpush.msra.mxu0 %v2039
  %v2041 = vand.u32 %v27, 4294901760
  %v2042 = vsub.f32 %v27, %v2041
  %v2043 = vand.u32 %v2042, 4294901760
  %v2044 = vsub.f32 %v2042, %v2043
  %v2045 = vand.u32 %v2044, 4294901760
  %2046 = vmatpush.msra.mxu0 %v2045
  %v2047 = vand.u32 %v26, 4294901760
  %v2048 = vsub.f32 %v26, %v2047
  %v2049 = vand.u32 %v2048, 4294901760
  %v2050 = vsub.f32 %v2048, %v2049
  %v2051 = vand.u32 %v2050, 4294901760
  %2052 = vmatpush.msra.mxu0 %v2051
  %v2053 = vand.u32 %v25, 4294901760
  %v2054 = vsub.f32 %v25, %v2053
  %v2055 = vand.u32 %v2054, 4294901760
  %v2056 = vsub.f32 %v2054, %v2055
  %v2057 = vand.u32 %v2056, 4294901760
  %2058 = vmatpush.msra.mxu0 %v2057
  %v2059 = vand.u32 %v24, 4294901760
  %v2060 = vsub.f32 %v24, %v2059
  %v2061 = vand.u32 %v2060, 4294901760
  %v2062 = vsub.f32 %v2060, %v2061
  %v2063 = vand.u32 %v2062, 4294901760
  %2064 = vmatpush.msra.mxu0 %v2063
  %v2065 = vand.u32 %v23, 4294901760
  %v2066 = vsub.f32 %v23, %v2065
  %v2067 = vand.u32 %v2066, 4294901760
  %v2068 = vsub.f32 %v2066, %v2067
  %v2069 = vand.u32 %v2068, 4294901760
  %2070 = vmatpush.msra.mxu0 %v2069
  %v2071 = vand.u32 %v1920, 4294901760
  %2072 = vmatmul.f32.gmra.mxu0 %v2071
  %v2073 = vpop.f32.mrf.mxu0
  %v2074 = vadd.f32 %v1965, %v2073
  %v2075 = vand.u32 %v1924, 4294901760
  %2076 = vmatmul.f32.gmra.mxu0 %v2075
  %v2077 = vpop.f32.mrf.mxu0
  %v2078 = vadd.f32 %v1973, %v2077
  %2079 = vdwg.mxu0
  %v2080 = vand.u32 %v38, 4294901760
  %v2081 = vsub.f32 %v38, %v2080
  %2082 = vmatpush.msra.mxu0 %v2081
  %v2083 = vand.u32 %v37, 4294901760
  %v2084 = vsub.f32 %v37, %v2083
  %2085 = vmatpush.msra.mxu0 %v2084
  %v2086 = vand.u32 %v36, 4294901760
  %v2087 = vsub.f32 %v36, %v2086
  %2088 = vmatpush.msra.mxu0 %v2087
  %v2089 = vand.u32 %v35, 4294901760
  %v2090 = vsub.f32 %v35, %v2089
  %2091 = vmatpush.msra.mxu0 %v2090
  %v2092 = vand.u32 %v34, 4294901760
  %v2093 = vsub.f32 %v34, %v2092
  %2094 = vmatpush.msra.mxu0 %v2093
  %v2095 = vand.u32 %v33, 4294901760
  %v2096 = vsub.f32 %v33, %v2095
  %2097 = vmatpush.msra.mxu0 %v2096
  %v2098 = vand.u32 %v32, 4294901760
  %v2099 = vsub.f32 %v32, %v2098
  %2100 = vmatpush.msra.mxu0 %v2099
  %v2101 = vand.u32 %v31, 4294901760
  %v2102 = vsub.f32 %v31, %v2101
  %2103 = vmatpush.msra.mxu0 %v2102
  %v2104 = vand.u32 %v30, 4294901760
  %v2105 = vsub.f32 %v30, %v2104
  %2106 = vmatpush.msra.mxu0 %v2105
  %v2107 = vand.u32 %v29, 4294901760
  %v2108 = vsub.f32 %v29, %v2107
  %2109 = vmatpush.msra.mxu0 %v2108
  %v2110 = vand.u32 %v28, 4294901760
  %v2111 = vsub.f32 %v28, %v2110
  %2112 = vmatpush.msra.mxu0 %v2111
  %v2113 = vand.u32 %v27, 4294901760
  %v2114 = vsub.f32 %v27, %v2113
  %2115 = vmatpush.msra.mxu0 %v2114
  %v2116 = vand.u32 %v26, 4294901760
  %v2117 = vsub.f32 %v26, %v2116
  %2118 = vmatpush.msra.mxu0 %v2117
  %v2119 = vand.u32 %v25, 4294901760
  %v2120 = vsub.f32 %v25, %v2119
  %2121 = vmatpush.msra.mxu0 %v2120
  %v2122 = vand.u32 %v24, 4294901760
  %v2123 = vsub.f32 %v24, %v2122
  %2124 = vmatpush.msra.mxu0 %v2123
  %v2125 = vand.u32 %v23, 4294901760
  %v2126 = vsub.f32 %v23, %v2125
  %2127 = vmatpush.msra.mxu0 %v2126
  %v2128 = vand.u32 %v1920, 4294901760
  %v2129 = vsub.f32 %v1920, %v2128
  %2130 = vmatmul.f32.gmra.mxu0 %v2129
  %v2131 = vpop.f32.mrf.mxu0
  %v2132 = vadd.f32 %v2074, %v2131
  %v2133 = vand.u32 %v1924, 4294901760
  %v2134 = vsub.f32 %v1924, %v2133
  %2135 = vmatmul.f32.gmra.mxu0 %v2134
  %v2136 = vpop.f32.mrf.mxu0
  %v2137 = vadd.f32 %v2078, %v2136
  %2138 = vdwg.mxu0
  %v2139 = vand.u32 %v38, 4294901760
  %2140 = vmatpush.msra.mxu0 %v2139
  %v2141 = vand.u32 %v37, 4294901760
  %2142 = vmatpush.msra.mxu0 %v2141
  %v2143 = vand.u32 %v36, 4294901760
  %2144 = vmatpush.msra.mxu0 %v2143
  %v2145 = vand.u32 %v35, 4294901760
  %2146 = vmatpush.msra.mxu0 %v2145
  %v2147 = vand.u32 %v34, 4294901760
  %2148 = vmatpush.msra.mxu0 %v2147
  %v2149 = vand.u32 %v33, 4294901760
  %2150 = vmatpush.msra.mxu0 %v2149
  %v2151 = vand.u32 %v32, 4294901760
  %2152 = vmatpush.msra.mxu0 %v2151
  %v2153 = vand.u32 %v31, 4294901760
  %2154 = vmatpush.msra.mxu0 %v2153
  %v2155 = vand.u32 %v30, 4294901760
  %2156 = vmatpush.msra.mxu0 %v2155
  %v2157 = vand.u32 %v29, 4294901760
  %2158 = vmatpush.msra.mxu0 %v2157
  %v2159 = vand.u32 %v28, 4294901760
  %2160 = vmatpush.msra.mxu0 %v2159
  %v2161 = vand.u32 %v27, 4294901760
  %2162 = vmatpush.msra.mxu0 %v2161
  %v2163 = vand.u32 %v26, 4294901760
  %2164 = vmatpush.msra.mxu0 %v2163
  %v2165 = vand.u32 %v25, 4294901760
  %2166 = vmatpush.msra.mxu0 %v2165
  %v2167 = vand.u32 %v24, 4294901760
  %2168 = vmatpush.msra.mxu0 %v2167
  %v2169 = vand.u32 %v23, 4294901760
  %2170 = vmatpush.msra.mxu0 %v2169
  %v2171 = vand.u32 %v1920, 4294901760
  %v2172 = vsub.f32 %v1920, %v2171
  %v2173 = vand.u32 %v2172, 4294901760
  %2174 = vmatmul.f32.gmra.mxu0 %v2173
  %v2175 = vpop.f32.mrf.mxu0
  %v2176 = vadd.f32 %v2132, %v2175
  %v2177 = vand.u32 %v1924, 4294901760
  %v2178 = vsub.f32 %v1924, %v2177
  %v2179 = vand.u32 %v2178, 4294901760
  %2180 = vmatmul.f32.gmra.mxu0 %v2179
  %v2181 = vpop.f32.mrf.mxu0
  %v2182 = vadd.f32 %v2137, %v2181
  %2183 = vdwg.mxu0
  %v2184 = vand.u32 %v38, 4294901760
  %v2185 = vsub.f32 %v38, %v2184
  %v2186 = vand.u32 %v2185, 4294901760
  %2187 = vmatpush.msra.mxu0 %v2186
  %v2188 = vand.u32 %v37, 4294901760
  %v2189 = vsub.f32 %v37, %v2188
  %v2190 = vand.u32 %v2189, 4294901760
  %2191 = vmatpush.msra.mxu0 %v2190
  %v2192 = vand.u32 %v36, 4294901760
  %v2193 = vsub.f32 %v36, %v2192
  %v2194 = vand.u32 %v2193, 4294901760
  %2195 = vmatpush.msra.mxu0 %v2194
  %v2196 = vand.u32 %v35, 4294901760
  %v2197 = vsub.f32 %v35, %v2196
  %v2198 = vand.u32 %v2197, 4294901760
  %2199 = vmatpush.msra.mxu0 %v2198
  %v2200 = vand.u32 %v34, 4294901760
  %v2201 = vsub.f32 %v34, %v2200
  %v2202 = vand.u32 %v2201, 4294901760
  %2203 = vmatpush.msra.mxu0 %v2202
  %v2204 = vand.u32 %v33, 4294901760
  %v2205 = vsub.f32 %v33, %v2204
  %v2206 = vand.u32 %v2205, 4294901760
  %2207 = vmatpush.msra.mxu0 %v2206
  %v2208 = vand.u32 %v32, 4294901760
  %v2209 = vsub.f32 %v32, %v2208
  %v2210 = vand.u32 %v2209, 4294901760
  %2211 = vmatpush.msra.mxu0 %v2210
  %v2212 = vand.u32 %v31, 4294901760
  %v2213 = vsub.f32 %v31, %v2212
  %v2214 = vand.u32 %v2213, 4294901760
  %2215 = vmatpush.msra.mxu0 %v2214
  %v2216 = vand.u32 %v30, 4294901760
  %v2217 = vsub.f32 %v30, %v2216
  %v2218 = vand.u32 %v2217, 4294901760
  %2219 = vmatpush.msra.mxu0 %v2218
  %v2220 = vand.u32 %v29, 4294901760
  %v2221 = vsub.f32 %v29, %v2220
  %v2222 = vand.u32 %v2221, 4294901760
  %2223 = vmatpush.msra.mxu0 %v2222
  %v2224 = vand.u32 %v28, 4294901760
  %v2225 = vsub.f32 %v28, %v2224
  %v2226 = vand.u32 %v2225, 4294901760
  %2227 = vmatpush.msra.mxu0 %v2226
  %v2228 = vand.u32 %v27, 4294901760
  %v2229 = vsub.f32 %v27, %v2228
  %v2230 = vand.u32 %v2229, 4294901760
  %2231 = vmatpush.msra.mxu0 %v2230
  %v2232 = vand.u32 %v26, 4294901760
  %v2233 = vsub.f32 %v26, %v2232
  %v2234 = vand.u32 %v2233, 4294901760
  %2235 = vmatpush.msra.mxu0 %v2234
  %v2236 = vand.u32 %v25, 4294901760
  %v2237 = vsub.f32 %v25, %v2236
  %v2238 = vand.u32 %v2237, 4294901760
  %2239 = vmatpush.msra.mxu0 %v2238
  %v2240 = vand.u32 %v24, 4294901760
  %v2241 = vsub.f32 %v24, %v2240
  %v2242 = vand.u32 %v2241, 4294901760
  %2243 = vmatpush.msra.mxu0 %v2242
  %v2244 = vand.u32 %v23, 4294901760
  %v2245 = vsub.f32 %v23, %v2244
  %v2246 = vand.u32 %v2245, 4294901760
  %2247 = vmatpush.msra.mxu0 %v2246
  %v2248 = vand.u32 %v1920, 4294901760
  %2249 = vmatmul.f32.gmra.mxu0 %v2248
  %v2250 = vpop.f32.mrf.mxu0
  %v2251 = vadd.f32 %v2176, %v2250
  %v2252 = vand.u32 %v1924, 4294901760
  %2253 = vmatmul.f32.gmra.mxu0 %v2252
  %v2254 = vpop.f32.mrf.mxu0
  %v2255 = vadd.f32 %v2182, %v2254
  %2256 = vdwg.mxu0
  %v2257 = vand.u32 %v38, 4294901760
  %2258 = vmatpush.msra.mxu0 %v2257
  %v2259 = vand.u32 %v37, 4294901760
  %2260 = vmatpush.msra.mxu0 %v2259
  %v2261 = vand.u32 %v36, 4294901760
  %2262 = vmatpush.msra.mxu0 %v2261
  %v2263 = vand.u32 %v35, 4294901760
  %2264 = vmatpush.msra.mxu0 %v2263
  %v2265 = vand.u32 %v34, 4294901760
  %2266 = vmatpush.msra.mxu0 %v2265
  %v2267 = vand.u32 %v33, 4294901760
  %2268 = vmatpush.msra.mxu0 %v2267
  %v2269 = vand.u32 %v32, 4294901760
  %2270 = vmatpush.msra.mxu0 %v2269
  %v2271 = vand.u32 %v31, 4294901760
  %2272 = vmatpush.msra.mxu0 %v2271
  %v2273 = vand.u32 %v30, 4294901760
  %2274 = vmatpush.msra.mxu0 %v2273
  %v2275 = vand.u32 %v29, 4294901760
  %2276 = vmatpush.msra.mxu0 %v2275
  %v2277 = vand.u32 %v28, 4294901760
  %2278 = vmatpush.msra.mxu0 %v2277
  %v2279 = vand.u32 %v27, 4294901760
  %2280 = vmatpush.msra.mxu0 %v2279
  %v2281 = vand.u32 %v26, 4294901760
  %2282 = vmatpush.msra.mxu0 %v2281
  %v2283 = vand.u32 %v25, 4294901760
  %2284 = vmatpush.msra.mxu0 %v2283
  %v2285 = vand.u32 %v24, 4294901760
  %2286 = vmatpush.msra.mxu0 %v2285
  %v2287 = vand.u32 %v23, 4294901760
  %2288 = vmatpush.msra.mxu0 %v2287
  %v2289 = vand.u32 %v1920, 4294901760
  %2290 = vmatmul.f32.gmra.mxu0 %v2289
  %v2291 = vpop.f32.mrf.mxu0
  %v2292 = vadd.f32 %v2251, %v2291
  %v2293 = vand.u32 %v1924, 4294901760
  %2294 = vmatmul.f32.gmra.mxu0 %v2293
  %v2295 = vpop.f32.mrf.mxu0
  %v2296 = vadd.f32 %v2255, %v2295
  %2297 = vdwg.mxu0
  %v2298 = vmul.f32 %v17, %v19
  %v2299 = vmul.f32 %v18, %v20
  %2300 = vmatpush.msra.mxu0 0.0
  %2301 = vmatpush.msra.mxu0 0.0
  %2302 = vmatpush.msra.mxu0 0.0
  %2303 = vmatpush.msra.mxu0 0.0
  %2304 = vmatpush.msra.mxu0 0.0
  %2305 = vmatpush.msra.mxu0 0.0
  %2306 = vmatpush.msra.mxu0 0.0
  %2307 = vmatpush.msra.mxu0 0.0
  %2308 = vmatpush.msra.mxu0 0.0
  %2309 = vmatpush.msra.mxu0 0.0
  %2310 = vmatpush.msra.mxu0 0.0
  %2311 = vmatpush.msra.mxu0 0.0
  %2312 = vmatpush.msra.mxu0 0.0
  %2313 = vmatpush.msra.mxu0 0.0
  %v2314 = vand.u32 %v2299, 4294901760
  %2315 = vmatpush.msra.mxu0 %v2314
  %v2316 = vand.u32 %v2298, 4294901760
  %2317 = vmatpush.msra.mxu0 %v2316
  %v2318 = vand.u32 %v41, 4294901760
  %v2319 = vsub.f32 %v41, %v2318
  %v2320 = vand.u32 %v2319, 4294901760
  %v2321 = vsub.f32 %v2319, %v2320
  %v2322 = vand.u32 %v2321, 4294901760
  %2323 = vmatmul.f32.gmra.mxu0 %v2322
  %v2324 = vpop.f32.mrf.mxu0
  %v2325 = vadd.f32 0.0, %v2324
  %v2326 = vand.u32 %v44, 4294901760
  %v2327 = vsub.f32 %v44, %v2326
  %v2328 = vand.u32 %v2327, 4294901760
  %v2329 = vsub.f32 %v2327, %v2328
  %v2330 = vand.u32 %v2329, 4294901760
  %2331 = vmatmul.f32.gmra.mxu0 %v2330
  %v2332 = vpop.f32.mrf.mxu0
  %v2333 = vadd.f32 0.0, %v2332
  %2334 = vdwg.mxu0
  %2335 = vmatpush.msra.mxu0 0.0
  %2336 = vmatpush.msra.mxu0 0.0
  %2337 = vmatpush.msra.mxu0 0.0
  %2338 = vmatpush.msra.mxu0 0.0
  %2339 = vmatpush.msra.mxu0 0.0
  %2340 = vmatpush.msra.mxu0 0.0
  %2341 = vmatpush.msra.mxu0 0.0
  %2342 = vmatpush.msra.mxu0 0.0
  %2343 = vmatpush.msra.mxu0 0.0
  %2344 = vmatpush.msra.mxu0 0.0
  %2345 = vmatpush.msra.mxu0 0.0
  %2346 = vmatpush.msra.mxu0 0.0
  %2347 = vmatpush.msra.mxu0 0.0
  %2348 = vmatpush.msra.mxu0 0.0
  %v2349 = vand.u32 %v2299, 4294901760
  %v2350 = vsub.f32 %v2299, %v2349
  %v2351 = vand.u32 %v2350, 4294901760
  %v2352 = vsub.f32 %v2350, %v2351
  %v2353 = vand.u32 %v2352, 4294901760
  %2354 = vmatpush.msra.mxu0 %v2353
  %v2355 = vand.u32 %v2298, 4294901760
  %v2356 = vsub.f32 %v2298, %v2355
  %v2357 = vand.u32 %v2356, 4294901760
  %v2358 = vsub.f32 %v2356, %v2357
  %v2359 = vand.u32 %v2358, 4294901760
  %2360 = vmatpush.msra.mxu0 %v2359
  %v2361 = vand.u32 %v41, 4294901760
  %2362 = vmatmul.f32.gmra.mxu0 %v2361
  %v2363 = vpop.f32.mrf.mxu0
  %v2364 = vadd.f32 %v2325, %v2363
  %v2365 = vand.u32 %v44, 4294901760
  %2366 = vmatmul.f32.gmra.mxu0 %v2365
  %v2367 = vpop.f32.mrf.mxu0
  %v2368 = vadd.f32 %v2333, %v2367
  %2369 = vdwg.mxu0
  %2370 = vmatpush.msra.mxu0 0.0
  %2371 = vmatpush.msra.mxu0 0.0
  %2372 = vmatpush.msra.mxu0 0.0
  %2373 = vmatpush.msra.mxu0 0.0
  %2374 = vmatpush.msra.mxu0 0.0
  %2375 = vmatpush.msra.mxu0 0.0
  %2376 = vmatpush.msra.mxu0 0.0
  %2377 = vmatpush.msra.mxu0 0.0
  %2378 = vmatpush.msra.mxu0 0.0
  %2379 = vmatpush.msra.mxu0 0.0
  %2380 = vmatpush.msra.mxu0 0.0
  %2381 = vmatpush.msra.mxu0 0.0
  %2382 = vmatpush.msra.mxu0 0.0
  %2383 = vmatpush.msra.mxu0 0.0
  %v2384 = vand.u32 %v2299, 4294901760
  %v2385 = vsub.f32 %v2299, %v2384
  %2386 = vmatpush.msra.mxu0 %v2385
  %v2387 = vand.u32 %v2298, 4294901760
  %v2388 = vsub.f32 %v2298, %v2387
  %2389 = vmatpush.msra.mxu0 %v2388
  %v2390 = vand.u32 %v41, 4294901760
  %v2391 = vsub.f32 %v41, %v2390
  %2392 = vmatmul.f32.gmra.mxu0 %v2391
  %v2393 = vpop.f32.mrf.mxu0
  %v2394 = vadd.f32 %v2364, %v2393
  %v2395 = vand.u32 %v44, 4294901760
  %v2396 = vsub.f32 %v44, %v2395
  %2397 = vmatmul.f32.gmra.mxu0 %v2396
  %v2398 = vpop.f32.mrf.mxu0
  %v2399 = vadd.f32 %v2368, %v2398
  %2400 = vdwg.mxu0
  %2401 = vmatpush.msra.mxu0 0.0
  %2402 = vmatpush.msra.mxu0 0.0
  %2403 = vmatpush.msra.mxu0 0.0
  %2404 = vmatpush.msra.mxu0 0.0
  %2405 = vmatpush.msra.mxu0 0.0
  %2406 = vmatpush.msra.mxu0 0.0
  %2407 = vmatpush.msra.mxu0 0.0
  %2408 = vmatpush.msra.mxu0 0.0
  %2409 = vmatpush.msra.mxu0 0.0
  %2410 = vmatpush.msra.mxu0 0.0
  %2411 = vmatpush.msra.mxu0 0.0
  %2412 = vmatpush.msra.mxu0 0.0
  %2413 = vmatpush.msra.mxu0 0.0
  %2414 = vmatpush.msra.mxu0 0.0
  %v2415 = vand.u32 %v2299, 4294901760
  %2416 = vmatpush.msra.mxu0 %v2415
  %v2417 = vand.u32 %v2298, 4294901760
  %2418 = vmatpush.msra.mxu0 %v2417
  %v2419 = vand.u32 %v41, 4294901760
  %v2420 = vsub.f32 %v41, %v2419
  %v2421 = vand.u32 %v2420, 4294901760
  %2422 = vmatmul.f32.gmra.mxu0 %v2421
  %v2423 = vpop.f32.mrf.mxu0
  %v2424 = vadd.f32 %v2394, %v2423
  %v2425 = vand.u32 %v44, 4294901760
  %v2426 = vsub.f32 %v44, %v2425
  %v2427 = vand.u32 %v2426, 4294901760
  %2428 = vmatmul.f32.gmra.mxu0 %v2427
  %v2429 = vpop.f32.mrf.mxu0
  %v2430 = vadd.f32 %v2399, %v2429
  %2431 = vdwg.mxu0
  %2432 = vmatpush.msra.mxu0 0.0
  %2433 = vmatpush.msra.mxu0 0.0
  %2434 = vmatpush.msra.mxu0 0.0
  %2435 = vmatpush.msra.mxu0 0.0
  %2436 = vmatpush.msra.mxu0 0.0
  %2437 = vmatpush.msra.mxu0 0.0
  %2438 = vmatpush.msra.mxu0 0.0
  %2439 = vmatpush.msra.mxu0 0.0
  %2440 = vmatpush.msra.mxu0 0.0
  %2441 = vmatpush.msra.mxu0 0.0
  %2442 = vmatpush.msra.mxu0 0.0
  %2443 = vmatpush.msra.mxu0 0.0
  %2444 = vmatpush.msra.mxu0 0.0
  %2445 = vmatpush.msra.mxu0 0.0
  %v2446 = vand.u32 %v2299, 4294901760
  %v2447 = vsub.f32 %v2299, %v2446
  %v2448 = vand.u32 %v2447, 4294901760
  %2449 = vmatpush.msra.mxu0 %v2448
  %v2450 = vand.u32 %v2298, 4294901760
  %v2451 = vsub.f32 %v2298, %v2450
  %v2452 = vand.u32 %v2451, 4294901760
  %2453 = vmatpush.msra.mxu0 %v2452
  %v2454 = vand.u32 %v41, 4294901760
  %2455 = vmatmul.f32.gmra.mxu0 %v2454
  %v2456 = vpop.f32.mrf.mxu0
  %v2457 = vadd.f32 %v2424, %v2456
  %v2458 = vand.u32 %v44, 4294901760
  %2459 = vmatmul.f32.gmra.mxu0 %v2458
  %v2460 = vpop.f32.mrf.mxu0
  %v2461 = vadd.f32 %v2430, %v2460
  %2462 = vdwg.mxu0
  %2463 = vmatpush.msra.mxu0 0.0
  %2464 = vmatpush.msra.mxu0 0.0
  %2465 = vmatpush.msra.mxu0 0.0
  %2466 = vmatpush.msra.mxu0 0.0
  %2467 = vmatpush.msra.mxu0 0.0
  %2468 = vmatpush.msra.mxu0 0.0
  %2469 = vmatpush.msra.mxu0 0.0
  %2470 = vmatpush.msra.mxu0 0.0
  %2471 = vmatpush.msra.mxu0 0.0
  %2472 = vmatpush.msra.mxu0 0.0
  %2473 = vmatpush.msra.mxu0 0.0
  %2474 = vmatpush.msra.mxu0 0.0
  %2475 = vmatpush.msra.mxu0 0.0
  %2476 = vmatpush.msra.mxu0 0.0
  %v2477 = vand.u32 %v2299, 4294901760
  %2478 = vmatpush.msra.mxu0 %v2477
  %v2479 = vand.u32 %v2298, 4294901760
  %2480 = vmatpush.msra.mxu0 %v2479
  %v2481 = vand.u32 %v41, 4294901760
  %2482 = vmatmul.f32.gmra.mxu0 %v2481
  %v2483 = vpop.f32.mrf.mxu0
  %v2484 = vadd.f32 %v2457, %v2483
  %v2485 = vand.u32 %v44, 4294901760
  %2486 = vmatmul.f32.gmra.mxu0 %v2485
  %v2487 = vpop.f32.mrf.mxu0
  %v2488 = vadd.f32 %v2461, %v2487
  %2489 = vdwg.mxu0
  %v2490 = vand.u32 %v38, 4294901760
  %2491 = vmatpush.msra.mxu0 %v2490
  %v2492 = vand.u32 %v37, 4294901760
  %2493 = vmatpush.msra.mxu0 %v2492
  %v2494 = vand.u32 %v36, 4294901760
  %2495 = vmatpush.msra.mxu0 %v2494
  %v2496 = vand.u32 %v35, 4294901760
  %2497 = vmatpush.msra.mxu0 %v2496
  %v2498 = vand.u32 %v34, 4294901760
  %2499 = vmatpush.msra.mxu0 %v2498
  %v2500 = vand.u32 %v33, 4294901760
  %2501 = vmatpush.msra.mxu0 %v2500
  %v2502 = vand.u32 %v32, 4294901760
  %2503 = vmatpush.msra.mxu0 %v2502
  %v2504 = vand.u32 %v31, 4294901760
  %2505 = vmatpush.msra.mxu0 %v2504
  %v2506 = vand.u32 %v30, 4294901760
  %2507 = vmatpush.msra.mxu0 %v2506
  %v2508 = vand.u32 %v29, 4294901760
  %2509 = vmatpush.msra.mxu0 %v2508
  %v2510 = vand.u32 %v28, 4294901760
  %2511 = vmatpush.msra.mxu0 %v2510
  %v2512 = vand.u32 %v27, 4294901760
  %2513 = vmatpush.msra.mxu0 %v2512
  %v2514 = vand.u32 %v26, 4294901760
  %2515 = vmatpush.msra.mxu0 %v2514
  %v2516 = vand.u32 %v25, 4294901760
  %2517 = vmatpush.msra.mxu0 %v2516
  %v2518 = vand.u32 %v24, 4294901760
  %2519 = vmatpush.msra.mxu0 %v2518
  %v2520 = vand.u32 %v23, 4294901760
  %2521 = vmatpush.msra.mxu0 %v2520
  %v2522 = vand.u32 %v2484, 4294901760
  %v2523 = vsub.f32 %v2484, %v2522
  %v2524 = vand.u32 %v2523, 4294901760
  %v2525 = vsub.f32 %v2523, %v2524
  %v2526 = vand.u32 %v2525, 4294901760
  %2527 = vmatmul.f32.gmra.mxu0 %v2526
  %v2528 = vpop.f32.mrf.mxu0
  %v2529 = vadd.f32 0.0, %v2528
  %v2530 = vand.u32 %v2488, 4294901760
  %v2531 = vsub.f32 %v2488, %v2530
  %v2532 = vand.u32 %v2531, 4294901760
  %v2533 = vsub.f32 %v2531, %v2532
  %v2534 = vand.u32 %v2533, 4294901760
  %2535 = vmatmul.f32.gmra.mxu0 %v2534
  %v2536 = vpop.f32.mrf.mxu0
  %v2537 = vadd.f32 0.0, %v2536
  %2538 = vdwg.mxu0
  %v2539 = vand.u32 %v38, 4294901760
  %v2540 = vsub.f32 %v38, %v2539
  %v2541 = vand.u32 %v2540, 4294901760
  %v2542 = vsub.f32 %v2540, %v2541
  %v2543 = vand.u32 %v2542, 4294901760
  %2544 = vmatpush.msra.mxu0 %v2543
  %v2545 = vand.u32 %v37, 4294901760
  %v2546 = vsub.f32 %v37, %v2545
  %v2547 = vand.u32 %v2546, 4294901760
  %v2548 = vsub.f32 %v2546, %v2547
  %v2549 = vand.u32 %v2548, 4294901760
  %2550 = vmatpush.msra.mxu0 %v2549
  %v2551 = vand.u32 %v36, 4294901760
  %v2552 = vsub.f32 %v36, %v2551
  %v2553 = vand.u32 %v2552, 4294901760
  %v2554 = vsub.f32 %v2552, %v2553
  %v2555 = vand.u32 %v2554, 4294901760
  %2556 = vmatpush.msra.mxu0 %v2555
  %v2557 = vand.u32 %v35, 4294901760
  %v2558 = vsub.f32 %v35, %v2557
  %v2559 = vand.u32 %v2558, 4294901760
  %v2560 = vsub.f32 %v2558, %v2559
  %v2561 = vand.u32 %v2560, 4294901760
  %2562 = vmatpush.msra.mxu0 %v2561
  %v2563 = vand.u32 %v34, 4294901760
  %v2564 = vsub.f32 %v34, %v2563
  %v2565 = vand.u32 %v2564, 4294901760
  %v2566 = vsub.f32 %v2564, %v2565
  %v2567 = vand.u32 %v2566, 4294901760
  %2568 = vmatpush.msra.mxu0 %v2567
  %v2569 = vand.u32 %v33, 4294901760
  %v2570 = vsub.f32 %v33, %v2569
  %v2571 = vand.u32 %v2570, 4294901760
  %v2572 = vsub.f32 %v2570, %v2571
  %v2573 = vand.u32 %v2572, 4294901760
  %2574 = vmatpush.msra.mxu0 %v2573
  %v2575 = vand.u32 %v32, 4294901760
  %v2576 = vsub.f32 %v32, %v2575
  %v2577 = vand.u32 %v2576, 4294901760
  %v2578 = vsub.f32 %v2576, %v2577
  %v2579 = vand.u32 %v2578, 4294901760
  %2580 = vmatpush.msra.mxu0 %v2579
  %v2581 = vand.u32 %v31, 4294901760
  %v2582 = vsub.f32 %v31, %v2581
  %v2583 = vand.u32 %v2582, 4294901760
  %v2584 = vsub.f32 %v2582, %v2583
  %v2585 = vand.u32 %v2584, 4294901760
  %2586 = vmatpush.msra.mxu0 %v2585
  %v2587 = vand.u32 %v30, 4294901760
  %v2588 = vsub.f32 %v30, %v2587
  %v2589 = vand.u32 %v2588, 4294901760
  %v2590 = vsub.f32 %v2588, %v2589
  %v2591 = vand.u32 %v2590, 4294901760
  %2592 = vmatpush.msra.mxu0 %v2591
  %v2593 = vand.u32 %v29, 4294901760
  %v2594 = vsub.f32 %v29, %v2593
  %v2595 = vand.u32 %v2594, 4294901760
  %v2596 = vsub.f32 %v2594, %v2595
  %v2597 = vand.u32 %v2596, 4294901760
  %2598 = vmatpush.msra.mxu0 %v2597
  %v2599 = vand.u32 %v28, 4294901760
  %v2600 = vsub.f32 %v28, %v2599
  %v2601 = vand.u32 %v2600, 4294901760
  %v2602 = vsub.f32 %v2600, %v2601
  %v2603 = vand.u32 %v2602, 4294901760
  %2604 = vmatpush.msra.mxu0 %v2603
  %v2605 = vand.u32 %v27, 4294901760
  %v2606 = vsub.f32 %v27, %v2605
  %v2607 = vand.u32 %v2606, 4294901760
  %v2608 = vsub.f32 %v2606, %v2607
  %v2609 = vand.u32 %v2608, 4294901760
  %2610 = vmatpush.msra.mxu0 %v2609
  %v2611 = vand.u32 %v26, 4294901760
  %v2612 = vsub.f32 %v26, %v2611
  %v2613 = vand.u32 %v2612, 4294901760
  %v2614 = vsub.f32 %v2612, %v2613
  %v2615 = vand.u32 %v2614, 4294901760
  %2616 = vmatpush.msra.mxu0 %v2615
  %v2617 = vand.u32 %v25, 4294901760
  %v2618 = vsub.f32 %v25, %v2617
  %v2619 = vand.u32 %v2618, 4294901760
  %v2620 = vsub.f32 %v2618, %v2619
  %v2621 = vand.u32 %v2620, 4294901760
  %2622 = vmatpush.msra.mxu0 %v2621
  %v2623 = vand.u32 %v24, 4294901760
  %v2624 = vsub.f32 %v24, %v2623
  %v2625 = vand.u32 %v2624, 4294901760
  %v2626 = vsub.f32 %v2624, %v2625
  %v2627 = vand.u32 %v2626, 4294901760
  %2628 = vmatpush.msra.mxu0 %v2627
  %v2629 = vand.u32 %v23, 4294901760
  %v2630 = vsub.f32 %v23, %v2629
  %v2631 = vand.u32 %v2630, 4294901760
  %v2632 = vsub.f32 %v2630, %v2631
  %v2633 = vand.u32 %v2632, 4294901760
  %2634 = vmatpush.msra.mxu0 %v2633
  %v2635 = vand.u32 %v2484, 4294901760
  %2636 = vmatmul.f32.gmra.mxu0 %v2635
  %v2637 = vpop.f32.mrf.mxu0
  %v2638 = vadd.f32 %v2529, %v2637
  %v2639 = vand.u32 %v2488, 4294901760
  %2640 = vmatmul.f32.gmra.mxu0 %v2639
  %v2641 = vpop.f32.mrf.mxu0
  %v2642 = vadd.f32 %v2537, %v2641
  %2643 = vdwg.mxu0
  %v2644 = vand.u32 %v38, 4294901760
  %v2645 = vsub.f32 %v38, %v2644
  %2646 = vmatpush.msra.mxu0 %v2645
  %v2647 = vand.u32 %v37, 4294901760
  %v2648 = vsub.f32 %v37, %v2647
  %2649 = vmatpush.msra.mxu0 %v2648
  %v2650 = vand.u32 %v36, 4294901760
  %v2651 = vsub.f32 %v36, %v2650
  %2652 = vmatpush.msra.mxu0 %v2651
  %v2653 = vand.u32 %v35, 4294901760
  %v2654 = vsub.f32 %v35, %v2653
  %2655 = vmatpush.msra.mxu0 %v2654
  %v2656 = vand.u32 %v34, 4294901760
  %v2657 = vsub.f32 %v34, %v2656
  %2658 = vmatpush.msra.mxu0 %v2657
  %v2659 = vand.u32 %v33, 4294901760
  %v2660 = vsub.f32 %v33, %v2659
  %2661 = vmatpush.msra.mxu0 %v2660
  %v2662 = vand.u32 %v32, 4294901760
  %v2663 = vsub.f32 %v32, %v2662
  %2664 = vmatpush.msra.mxu0 %v2663
  %v2665 = vand.u32 %v31, 4294901760
  %v2666 = vsub.f32 %v31, %v2665
  %2667 = vmatpush.msra.mxu0 %v2666
  %v2668 = vand.u32 %v30, 4294901760
  %v2669 = vsub.f32 %v30, %v2668
  %2670 = vmatpush.msra.mxu0 %v2669
  %v2671 = vand.u32 %v29, 4294901760
  %v2672 = vsub.f32 %v29, %v2671
  %2673 = vmatpush.msra.mxu0 %v2672
  %v2674 = vand.u32 %v28, 4294901760
  %v2675 = vsub.f32 %v28, %v2674
  %2676 = vmatpush.msra.mxu0 %v2675
  %v2677 = vand.u32 %v27, 4294901760
  %v2678 = vsub.f32 %v27, %v2677
  %2679 = vmatpush.msra.mxu0 %v2678
  %v2680 = vand.u32 %v26, 4294901760
  %v2681 = vsub.f32 %v26, %v2680
  %2682 = vmatpush.msra.mxu0 %v2681
  %v2683 = vand.u32 %v25, 4294901760
  %v2684 = vsub.f32 %v25, %v2683
  %2685 = vmatpush.msra.mxu0 %v2684
  %v2686 = vand.u32 %v24, 4294901760
  %v2687 = vsub.f32 %v24, %v2686
  %2688 = vmatpush.msra.mxu0 %v2687
  %v2689 = vand.u32 %v23, 4294901760
  %v2690 = vsub.f32 %v23, %v2689
  %2691 = vmatpush.msra.mxu0 %v2690
  %v2692 = vand.u32 %v2484, 4294901760
  %v2693 = vsub.f32 %v2484, %v2692
  %2694 = vmatmul.f32.gmra.mxu0 %v2693
  %v2695 = vpop.f32.mrf.mxu0
  %v2696 = vadd.f32 %v2638, %v2695
  %v2697 = vand.u32 %v2488, 4294901760
  %v2698 = vsub.f32 %v2488, %v2697
  %2699 = vmatmul.f32.gmra.mxu0 %v2698
  %v2700 = vpop.f32.mrf.mxu0
  %v2701 = vadd.f32 %v2642, %v2700
  %2702 = vdwg.mxu0
  %v2703 = vand.u32 %v38, 4294901760
  %2704 = vmatpush.msra.mxu0 %v2703
  %v2705 = vand.u32 %v37, 4294901760
  %2706 = vmatpush.msra.mxu0 %v2705
  %v2707 = vand.u32 %v36, 4294901760
  %2708 = vmatpush.msra.mxu0 %v2707
  %v2709 = vand.u32 %v35, 4294901760
  %2710 = vmatpush.msra.mxu0 %v2709
  %v2711 = vand.u32 %v34, 4294901760
  %2712 = vmatpush.msra.mxu0 %v2711
  %v2713 = vand.u32 %v33, 4294901760
  %2714 = vmatpush.msra.mxu0 %v2713
  %v2715 = vand.u32 %v32, 4294901760
  %2716 = vmatpush.msra.mxu0 %v2715
  %v2717 = vand.u32 %v31, 4294901760
  %2718 = vmatpush.msra.mxu0 %v2717
  %v2719 = vand.u32 %v30, 4294901760
  %2720 = vmatpush.msra.mxu0 %v2719
  %v2721 = vand.u32 %v29, 4294901760
  %2722 = vmatpush.msra.mxu0 %v2721
  %v2723 = vand.u32 %v28, 4294901760
  %2724 = vmatpush.msra.mxu0 %v2723
  %v2725 = vand.u32 %v27, 4294901760
  %2726 = vmatpush.msra.mxu0 %v2725
  %v2727 = vand.u32 %v26, 4294901760
  %2728 = vmatpush.msra.mxu0 %v2727
  %v2729 = vand.u32 %v25, 4294901760
  %2730 = vmatpush.msra.mxu0 %v2729
  %v2731 = vand.u32 %v24, 4294901760
  %2732 = vmatpush.msra.mxu0 %v2731
  %v2733 = vand.u32 %v23, 4294901760
  %2734 = vmatpush.msra.mxu0 %v2733
  %v2735 = vand.u32 %v2484, 4294901760
  %v2736 = vsub.f32 %v2484, %v2735
  %v2737 = vand.u32 %v2736, 4294901760
  %2738 = vmatmul.f32.gmra.mxu0 %v2737
  %v2739 = vpop.f32.mrf.mxu0
  %v2740 = vadd.f32 %v2696, %v2739
  %v2741 = vand.u32 %v2488, 4294901760
  %v2742 = vsub.f32 %v2488, %v2741
  %v2743 = vand.u32 %v2742, 4294901760
  %2744 = vmatmul.f32.gmra.mxu0 %v2743
  %v2745 = vpop.f32.mrf.mxu0
  %v2746 = vadd.f32 %v2701, %v2745
  %2747 = vdwg.mxu0
  %v2748 = vand.u32 %v38, 4294901760
  %v2749 = vsub.f32 %v38, %v2748
  %v2750 = vand.u32 %v2749, 4294901760
  %2751 = vmatpush.msra.mxu0 %v2750
  %v2752 = vand.u32 %v37, 4294901760
  %v2753 = vsub.f32 %v37, %v2752
  %v2754 = vand.u32 %v2753, 4294901760
  %2755 = vmatpush.msra.mxu0 %v2754
  %v2756 = vand.u32 %v36, 4294901760
  %v2757 = vsub.f32 %v36, %v2756
  %v2758 = vand.u32 %v2757, 4294901760
  %2759 = vmatpush.msra.mxu0 %v2758
  %v2760 = vand.u32 %v35, 4294901760
  %v2761 = vsub.f32 %v35, %v2760
  %v2762 = vand.u32 %v2761, 4294901760
  %2763 = vmatpush.msra.mxu0 %v2762
  %v2764 = vand.u32 %v34, 4294901760
  %v2765 = vsub.f32 %v34, %v2764
  %v2766 = vand.u32 %v2765, 4294901760
  %2767 = vmatpush.msra.mxu0 %v2766
  %v2768 = vand.u32 %v33, 4294901760
  %v2769 = vsub.f32 %v33, %v2768
  %v2770 = vand.u32 %v2769, 4294901760
  %2771 = vmatpush.msra.mxu0 %v2770
  %v2772 = vand.u32 %v32, 4294901760
  %v2773 = vsub.f32 %v32, %v2772
  %v2774 = vand.u32 %v2773, 4294901760
  %2775 = vmatpush.msra.mxu0 %v2774
  %v2776 = vand.u32 %v31, 4294901760
  %v2777 = vsub.f32 %v31, %v2776
  %v2778 = vand.u32 %v2777, 4294901760
  %2779 = vmatpush.msra.mxu0 %v2778
  %v2780 = vand.u32 %v30, 4294901760
  %v2781 = vsub.f32 %v30, %v2780
  %v2782 = vand.u32 %v2781, 4294901760
  %2783 = vmatpush.msra.mxu0 %v2782
  %v2784 = vand.u32 %v29, 4294901760
  %v2785 = vsub.f32 %v29, %v2784
  %v2786 = vand.u32 %v2785, 4294901760
  %2787 = vmatpush.msra.mxu0 %v2786
  %v2788 = vand.u32 %v28, 4294901760
  %v2789 = vsub.f32 %v28, %v2788
  %v2790 = vand.u32 %v2789, 4294901760
  %2791 = vmatpush.msra.mxu0 %v2790
  %v2792 = vand.u32 %v27, 4294901760
  %v2793 = vsub.f32 %v27, %v2792
  %v2794 = vand.u32 %v2793, 4294901760
  %2795 = vmatpush.msra.mxu0 %v2794
  %v2796 = vand.u32 %v26, 4294901760
  %v2797 = vsub.f32 %v26, %v2796
  %v2798 = vand.u32 %v2797, 4294901760
  %2799 = vmatpush.msra.mxu0 %v2798
  %v2800 = vand.u32 %v25, 4294901760
  %v2801 = vsub.f32 %v25, %v2800
  %v2802 = vand.u32 %v2801, 4294901760
  %2803 = vmatpush.msra.mxu0 %v2802
  %v2804 = vand.u32 %v24, 4294901760
  %v2805 = vsub.f32 %v24, %v2804
  %v2806 = vand.u32 %v2805, 4294901760
  %2807 = vmatpush.msra.mxu0 %v2806
  %v2808 = vand.u32 %v23, 4294901760
  %v2809 = vsub.f32 %v23, %v2808
  %v2810 = vand.u32 %v2809, 4294901760
  %2811 = vmatpush.msra.mxu0 %v2810
  %v2812 = vand.u32 %v2484, 4294901760
  %2813 = vmatmul.f32.gmra.mxu0 %v2812
  %v2814 = vpop.f32.mrf.mxu0
  %v2815 = vadd.f32 %v2740, %v2814
  %v2816 = vand.u32 %v2488, 4294901760
  %2817 = vmatmul.f32.gmra.mxu0 %v2816
  %v2818 = vpop.f32.mrf.mxu0
  %v2819 = vadd.f32 %v2746, %v2818
  %2820 = vdwg.mxu0
  %v2821 = vand.u32 %v38, 4294901760
  %2822 = vmatpush.msra.mxu0 %v2821
  %v2823 = vand.u32 %v37, 4294901760
  %2824 = vmatpush.msra.mxu0 %v2823
  %v2825 = vand.u32 %v36, 4294901760
  %2826 = vmatpush.msra.mxu0 %v2825
  %v2827 = vand.u32 %v35, 4294901760
  %2828 = vmatpush.msra.mxu0 %v2827
  %v2829 = vand.u32 %v34, 4294901760
  %2830 = vmatpush.msra.mxu0 %v2829
  %v2831 = vand.u32 %v33, 4294901760
  %2832 = vmatpush.msra.mxu0 %v2831
  %v2833 = vand.u32 %v32, 4294901760
  %2834 = vmatpush.msra.mxu0 %v2833
  %v2835 = vand.u32 %v31, 4294901760
  %2836 = vmatpush.msra.mxu0 %v2835
  %v2837 = vand.u32 %v30, 4294901760
  %2838 = vmatpush.msra.mxu0 %v2837
  %v2839 = vand.u32 %v29, 4294901760
  %2840 = vmatpush.msra.mxu0 %v2839
  %v2841 = vand.u32 %v28, 4294901760
  %2842 = vmatpush.msra.mxu0 %v2841
  %v2843 = vand.u32 %v27, 4294901760
  %2844 = vmatpush.msra.mxu0 %v2843
  %v2845 = vand.u32 %v26, 4294901760
  %2846 = vmatpush.msra.mxu0 %v2845
  %v2847 = vand.u32 %v25, 4294901760
  %2848 = vmatpush.msra.mxu0 %v2847
  %v2849 = vand.u32 %v24, 4294901760
  %2850 = vmatpush.msra.mxu0 %v2849
  %v2851 = vand.u32 %v23, 4294901760
  %2852 = vmatpush.msra.mxu0 %v2851
  %v2853 = vand.u32 %v2484, 4294901760
  %2854 = vmatmul.f32.gmra.mxu0 %v2853
  %v2855 = vpop.f32.mrf.mxu0
  %v2856 = vadd.f32 %v2815, %v2855
  %v2857 = vand.u32 %v2488, 4294901760
  %2858 = vmatmul.f32.gmra.mxu0 %v2857
  %v2859 = vpop.f32.mrf.mxu0
  %v2860 = vadd.f32 %v2819, %v2859
  %2861 = vdwg.mxu0
  %v2862 = vmul.f32 %v602, %v602
  %v2863 = vmul.f32 %v606, %v606
  %v2864 = vmul.f32 %v1164, %v1164
  %v2865 = vmul.f32 %v1168, %v1168
  %v2866 = vmul.f32 %v602, %v1164
  %v2867 = vmul.f32 %v606, %v1168
  %v2868 = vsub.f32 %v1728, %v2862
  %v2869 = vsub.f32 %v1732, %v2863
  %v2870 = vsub.f32 %v2292, %v2864
  %v2871 = vsub.f32 %v2296, %v2865
  %v2872 = vsub.f32 %v2856, %v2866
  %v2873 = vsub.f32 %v2860, %v2867
  %v2874 = vmul.f32 %v2866, 2.0
  %v2875 = vmul.f32 %v2867, 2.0
  %v2876 = vadd.f32 %v2874, 0.0001
  %v2877 = vadd.f32 %v2875, 0.0001
  %v2878 = vmul.f32 %v2872, 2.0
  %v2879 = vmul.f32 %v2873, 2.0
  %v2880 = vadd.f32 %v2878, 0.0009
  %v2881 = vadd.f32 %v2879, 0.0009
  %v2882 = vmul.f32 %v2876, %v2880
  %v2883 = vmul.f32 %v2877, %v2881
  %v2884 = vadd.f32 %v2862, %v2864
  %v2885 = vadd.f32 %v2863, %v2865
  %v2886 = vadd.f32 %v2884, 0.0001
  %v2887 = vadd.f32 %v2885, 0.0001
  %v2888 = vadd.f32 %v2868, %v2870
  %v2889 = vadd.f32 %v2869, %v2871
  %v2890 = vadd.f32 %v2888, 0.0009
  %v2891 = vadd.f32 %v2889, 0.0009
  %v2892 = vmul.f32 %v2886, %v2890
  %v2893 = vmul.f32 %v2887, %v2891
  %v2894 = vrcp.pop %v2892
  %v2895 = vrcp.pop %v2893
  %v2896 = vmul.f32 %v2882, %v2894
  %v2897 = vmul.f32 %v2883, %v2895
  %v2898 = vadd.f32 %v2896, %v2897
  %v2899 = vrot.slane %v2898, 4
  %v2900 = vadd.f32 %v2898, %v2899
  %v2901 = vrot.slane %v2900, 2
  %v2902 = vadd.f32 %v2900, %v2901
  %v2903 = vrot.slane %v2902, 1
  %v2904 = vadd.f32 %v2902, %v2903
  %2905 = vst [vmem:[%s4] sm:$0x1] %v2904
  // Predicated region
  $region18: #{run.1} parent=0 // pred_check
    _
  $region19: #{run.1} parent=0 // pred_check_branch
    %2907 = sbr.rel (0) target = $region21
  $region20: #{run.1} parent=0 // pred_region
    _
  $region21: #{run.1} parent=0 // pred_fallthru
    _
  // Predicated region
  $region22: #{run.1} parent=0 // pred_check
    _
  $region23: #{run.1} parent=0 // pred_check_branch
    %2909 = sbr.rel (0) target = $region25
  $region24: #{run.1} parent=0 // pred_region
    _
  $region25: #{run.1} parent=0 // pred_fallthru
    _

</llo_original>
